<compile_context>
chip_gen: v7x
topology: tpu7x:2x2x1
jax: 0.10.0
libtpu: 0.0.40
codegen_flags: <defaults>
</compile_context>

<pallas_src>
import jax
import jax.numpy as jnp
from jax import lax
from jax.experimental import pallas as pl
from jax.experimental.pallas import tpu as pltpu

EMBEDDING_DIM = 16
N_CLASSES = 3
VOCAB_SIZE = 1000
HIDDEN = EMBEDDING_DIM
FC1_OUT = 10


def sentiment_kernel(ids_ref,        # (T*B, 1) int32, row t*B+b = token[b, t]
                     proj_ref,       # (V, 8H) f32: [emb @ W_ih_f^T | emb @ W_ih_b^T]
                     whh_f_ref,      # (H, 4H) forward recurrent weights
                     b_f_ref,        # (1, 4H) forward bias (b_ih + b_hh)
                     b_b_ref,        # (1, 4H) backward bias (b_ih + b_hh)
                     w1_ref, b1_ref, # (2H, 10), (1, 10)
                     w2_ref, b2_ref, # (10, 3), (1, 3)
                     out_ref):       # (B, 3)
    TB = ids_ref.shape[0]
    B = out_ref.shape[0]
    T = TB // B
    H = HIDDEN
    V = proj_ref.shape[0]

    # ---- fused embedding gather + input projection (both directions), one matmul ---
    ids = ids_ref[...]                                         # (TB, 1) int32
    iota = lax.broadcasted_iota(jnp.int32, (TB, V), 1)
    onehot = (iota == ids).astype(jnp.float32)                 # (TB, V) exact row select
    xproj = jnp.dot(onehot, proj_ref[...],
                    preferred_element_type=jnp.float32)        # (TB, 8H) == (TB, 128)

    whh_f = whh_f_ref[...]
    b_f = b_f_ref[...]

    def activate(gates):
        sig = jax.nn.sigmoid(gates)                            # packed: one EUP pass
        tg = jnp.tanh(gates)                                   # packed: one EUP pass
        i = sig[:, 0 * H:1 * H]
        f = sig[:, 1 * H:2 * H]
        g = tg[:, 2 * H:3 * H]
        o = sig[:, 3 * H:4 * H]
        return i, f, g, o

    # ---- forward recurrence, fully unrolled (T static) ----------------------------
    h = jnp.zeros((B, H), jnp.float32)
    c = jnp.zeros((B, H), jnp.float32)
    for t in range(T):
        gates = (xproj[t * B:(t + 1) * B, 0:4 * H] + b_f
                 + jnp.dot(h, whh_f, preferred_element_type=jnp.float32))
        i, f, g, o = activate(gates)
        c = f * c + i * g
        h = o * jnp.tanh(c)
    h_fwd = h

    # ---- backward direction at position T-1: one cell from a zero state -----------
    # h0 @ W_hh_b == 0 (so W_hh_b is not needed) and f * c0 == 0.
    gates_b = xproj[(T - 1) * B:T * B, 4 * H:8 * H] + b_b_ref[...]
    i_b, _, g_b, o_b = activate(gates_b)
    c_b = i_b * g_b
    h_bwd = o_b * jnp.tanh(c_b)

    # ---- heads: fc1 on lane-concat, ReLU, fc2 --------------------------------------
    hcat = jnp.concatenate([h_fwd, h_bwd], axis=1)             # (B, 2H)
    z1 = jnp.dot(hcat, w1_ref[...], preferred_element_type=jnp.float32) + b1_ref[...]
    z1 = jnp.maximum(z1, 0.0)
    out_ref[...] = (jnp.dot(z1, w2_ref[...], preferred_element_type=jnp.float32)
                    + b2_ref[...])


def init_params(key):
    D, H = EMBEDDING_DIM, HIDDEN
    keys = jax.random.split(key, 12)
    scale = 1.0 / jnp.sqrt(jnp.float32(H))   # PyTorch-style uniform(-1/sqrt(H), 1/sqrt(H))

    def u(k, shape):
        return jax.random.uniform(k, shape, jnp.float32, -scale, scale)

    emb = jax.random.normal(keys[0], (VOCAB_SIZE, D), jnp.float32) * 0.1
    emb = emb.at[0].set(0.0)                 # padding_idx=0

    wih_f = u(keys[1], (4 * H, D)); whh_f = u(keys[2], (4 * H, H))
    bih_f = u(keys[3], (4 * H,));   bhh_f = u(keys[4], (4 * H,))
    wih_b = u(keys[5], (4 * H, D)); whh_b = u(keys[6], (4 * H, H))  # whh_b never reaches output[:, -1, :]
    bih_b = u(keys[7], (4 * H,));   bhh_b = u(keys[8], (4 * H,))
    w1 = u(keys[9], (FC1_OUT, 2 * H));      b1 = u(keys[10], (FC1_OUT,))
    w2 = u(keys[11], (N_CLASSES, FC1_OUT)); b2 = jnp.zeros((N_CLASSES,), jnp.float32)

    # Weight-only constant precompute (done once here, not per call):
    #   onehot @ (emb @ W_ih^T) == emb[id] @ W_ih^T  exactly.
    # Concatenate both directions along lanes -> (V, 8H) == (V, 128) lane-dense table.
    proj_table = jnp.concatenate([emb @ wih_f.T, emb @ wih_b.T], axis=1)

    return dict(
        proj_table=proj_table,
        whh_f_T=whh_f.T,
        b_f=(bih_f + bhh_f).reshape(1, 4 * H),
        b_b=(bih_b + bhh_b).reshape(1, 4 * H),
        w1_T=w1.T, b1=b1.reshape(1, FC1_OUT),
        w2_T=w2.T, b2=b2.reshape(1, N_CLASSES),
        # Raw PyTorch-layout weights, kept only for the pure-JAX reference check.
        raw=dict(emb=emb, wih_f=wih_f, whh_f=whh_f, bih_f=bih_f, bhh_f=bhh_f,
                 wih_b=wih_b, whh_b=whh_b, bih_b=bih_b, bhh_b=bhh_b,
                 w1=w1, b1=b1, w2=w2, b2=b2),
    )


def sentiment_forward(token_ids, params):
    B, T = token_ids.shape
    # Time-major flatten of the int ids (a few bytes of XLA glue); the f32 embedding
    # gather + projection happens inside the kernel.
    ids_tm = token_ids.astype(jnp.int32).T.reshape(T * B, 1)

    args = (ids_tm, params["proj_table"], params["whh_f_T"],
            params["b_f"], params["b_b"],
            params["w1_T"], params["b1"], params["w2_T"], params["b2"])

    vmem = pl.BlockSpec(memory_space=pltpu.MemorySpace.VMEM)
    # No grid: total footprint (~0.7 MB VMEM) is tiny on every generation, so grid
    # pipelining would only add per-step overhead.  For much larger batches, add a
    # leading batch-chunk grid axis with dimension_semantics=("parallel",).
    return pl.pallas_call(
        sentiment_kernel,
        out_shape=jax.ShapeDtypeStruct((B, N_CLASSES), jnp.float32),
        in_specs=[vmem] * len(args),
        out_specs=vmem,
    )(*args)


def sentiment_ref(token_ids, raw):
    """Pure-JAX reference matching the PyTorch forward (dropout = identity)."""
    H = HIDDEN
    emb = raw["emb"][token_ids]                         # (B, T, D)
    B, T, _ = emb.shape

    def cell(x_t, h, c, wih, whh, bih, bhh):
        gates = x_t @ wih.T + bih + h @ whh.T + bhh
        i = jax.nn.sigmoid(gates[:, 0 * H:1 * H])
        f = jax.nn.sigmoid(gates[:, 1 * H:2 * H])
        g = jnp.tanh(gates[:, 2 * H:3 * H])
        o = jax.nn.sigmoid(gates[:, 3 * H:4 * H])
        c = f * c + i * g
        return o * jnp.tanh(c), c

    h = jnp.zeros((B, H), jnp.float32); c = jnp.zeros((B, H), jnp.float32)
    for t in range(T):
        h, c = cell(emb[:, t], h, c, raw["wih_f"], raw["whh_f"], raw["bih_f"], raw["bhh_f"])
    hb = jnp.zeros((B, H), jnp.float32); cb = jnp.zeros((B, H), jnp.float32)
    hb, _ = cell(emb[:, T - 1], hb, cb, raw["wih_b"], raw["whh_b"], raw["bih_b"], raw["bhh_b"])

    hcat = jnp.concatenate([h, hb], axis=1)
    z1 = jnp.maximum(hcat @ raw["w1"].T + raw["b1"], 0.0)
    return z1 @ raw["w2"].T + raw["b2"]


if __name__ == "__main__":
    key = jax.random.PRNGKey(0)
    pkey, dkey = jax.random.split(key)
    params = init_params(pkey)

    B, T = 2, 8
    token_ids = jax.random.randint(dkey, (B, T), 0, VOCAB_SIZE, dtype=jnp.int32)

    logits = jax.block_until_ready(sentiment_forward(token_ids, params))
    assert logits.shape == (B, N_CLASSES) and logits.dtype == jnp.float32

    ref = jax.block_until_ready(sentiment_ref(token_ids, params["raw"]))
    assert jnp.allclose(logits, ref, atol=1e-3, rtol=1e-3), "kernel/reference mismatch"
    print("KERNEL_OK")
</pallas_src>

<mosaic_0001>
module attributes {stable_mosaic.version = 11 : i64} {
  func.func @sentiment_kernel(%arg0: memref<16x1xi32, #tpu.memory_space<vmem>>, %arg1: memref<1000x128xf32, #tpu.memory_space<vmem>>, %arg2: memref<16x64xf32, #tpu.memory_space<vmem>>, %arg3: memref<1x64xf32, #tpu.memory_space<vmem>>, %arg4: memref<1x64xf32, #tpu.memory_space<vmem>>, %arg5: memref<32x10xf32, #tpu.memory_space<vmem>>, %arg6: memref<1x10xf32, #tpu.memory_space<vmem>>, %arg7: memref<10x3xf32, #tpu.memory_space<vmem>>, %arg8: memref<1x3xf32, #tpu.memory_space<vmem>>, %arg9: memref<2x3xf32, #tpu.memory_space<vmem>>) attributes {dimension_semantics = [], scalar_prefetch = 0 : i64, scratch_operands = 0 : i64, tpu.core_type = #tpu.core_type<tc>} {
    %c0 = arith.constant 0 : index
    %c0_0 = arith.constant 0 : index
    %0 = vector.load %arg0[%c0, %c0_0] : memref<16x1xi32, #tpu.memory_space<vmem>>, vector<16x1xi32>
    %1 = tpu.iota {dimensions = array<i32: 1>} : vector<16x1000xi32>
    %2 = vector.broadcast %0 : vector<16x1xi32> to vector<16x1000xi32>
    %3 = arith.cmpi eq, %1, %2 : vector<16x1000xi32>
    %4 = arith.extui %3 : vector<16x1000xi1> to vector<16x1000xi32>
    %5 = arith.sitofp %4 : vector<16x1000xi32> to vector<16x1000xf32>
    %c0_1 = arith.constant 0 : index
    %c0_2 = arith.constant 0 : index
    %6 = vector.load %arg1[%c0_1, %c0_2] : memref<1000x128xf32, #tpu.memory_space<vmem>>, vector<1000x128xf32>
    %cst = arith.constant dense<0.000000e+00> : vector<16x128xf32>
    %7 = tpu.matmul %5, %6, %cst {dimension_numbers = #tpu.dot_dimension_numbers<[1], [0], [0], [1], [0, 0, 1, 1], [], []>} : vector<16x1000xf32>, vector<1000x128xf32>, vector<16x128xf32> -> vector<16x128xf32>
    %c0_3 = arith.constant 0 : index
    %c0_4 = arith.constant 0 : index
    %8 = vector.load %arg2[%c0_3, %c0_4] : memref<16x64xf32, #tpu.memory_space<vmem>>, vector<16x64xf32>
    %c0_5 = arith.constant 0 : index
    %c0_6 = arith.constant 0 : index
    %9 = vector.load %arg3[%c0_5, %c0_6] : memref<1x64xf32, #tpu.memory_space<vmem>>, vector<1x64xf32>
    %cst_7 = arith.constant 0.000000e+00 : f32
    %10 = vector.broadcast %cst_7 : f32 to vector<2x16xf32>
    %cst_8 = arith.constant 0.000000e+00 : f32
    %11 = vector.broadcast %cst_8 : f32 to vector<2x16xf32>
    %12 = vector.extract_strided_slice %7 {offsets = [0, 0], sizes = [2, 64], strides = [1, 1]} : vector<16x128xf32> to vector<2x64xf32>
    %13 = vector.broadcast %9 : vector<1x64xf32> to vector<2x64xf32>
    %14 = arith.addf %12, %13 : vector<2x64xf32>
    %cst_9 = arith.constant dense<0.000000e+00> : vector<2x64xf32>
    %15 = tpu.matmul %10, %8, %cst_9 {dimension_numbers = #tpu.dot_dimension_numbers<[1], [0], [0], [1], [0, 0, 1, 1], [], []>} : vector<2x16xf32>, vector<16x64xf32>, vector<2x64xf32> -> vector<2x64xf32>
    %16 = arith.addf %14, %15 : vector<2x64xf32>
    %17 = arith.negf %16 : vector<2x64xf32>
    %18 = math.exp %17 : vector<2x64xf32>
    %cst_10 = arith.constant 1.000000e+00 : f32
    %19 = vector.broadcast %cst_10 : f32 to vector<2x64xf32>
    %20 = arith.addf %19, %18 : vector<2x64xf32>
    %21 = arith.divf %19, %20 : vector<2x64xf32>
    %22 = math.tanh %16 : vector<2x64xf32>
    %23 = vector.extract_strided_slice %21 {offsets = [0, 0], sizes = [2, 16], strides = [1, 1]} : vector<2x64xf32> to vector<2x16xf32>
    %24 = vector.extract_strided_slice %21 {offsets = [0, 16], sizes = [2, 16], strides = [1, 1]} : vector<2x64xf32> to vector<2x16xf32>
    %25 = vector.extract_strided_slice %22 {offsets = [0, 32], sizes = [2, 16], strides = [1, 1]} : vector<2x64xf32> to vector<2x16xf32>
    %26 = vector.extract_strided_slice %21 {offsets = [0, 48], sizes = [2, 16], strides = [1, 1]} : vector<2x64xf32> to vector<2x16xf32>
    %27 = arith.mulf %24, %11 : vector<2x16xf32>
    %28 = arith.mulf %23, %25 : vector<2x16xf32>
    %29 = arith.addf %27, %28 : vector<2x16xf32>
    %30 = math.tanh %29 : vector<2x16xf32>
    %31 = arith.mulf %26, %30 : vector<2x16xf32>
    %32 = vector.extract_strided_slice %7 {offsets = [2, 0], sizes = [2, 64], strides = [1, 1]} : vector<16x128xf32> to vector<2x64xf32>
    %33 = vector.broadcast %9 : vector<1x64xf32> to vector<2x64xf32>
    %34 = arith.addf %32, %33 : vector<2x64xf32>
    %cst_11 = arith.constant dense<0.000000e+00> : vector<2x64xf32>
    %35 = tpu.matmul %31, %8, %cst_11 {dimension_numbers = #tpu.dot_dimension_numbers<[1], [0], [0], [1], [0, 0, 1, 1], [], []>} : vector<2x16xf32>, vector<16x64xf32>, vector<2x64xf32> -> vector<2x64xf32>
    %36 = arith.addf %34, %35 : vector<2x64xf32>
    %37 = arith.negf %36 : vector<2x64xf32>
    %38 = math.exp %37 : vector<2x64xf32>
    %cst_12 = arith.constant 1.000000e+00 : f32
    %39 = vector.broadcast %cst_12 : f32 to vector<2x64xf32>
    %40 = arith.addf %39, %38 : vector<2x64xf32>
    %41 = arith.divf %39, %40 : vector<2x64xf32>
    %42 = math.tanh %36 : vector<2x64xf32>
    %43 = vector.extract_strided_slice %41 {offsets = [0, 0], sizes = [2, 16], strides = [1, 1]} : vector<2x64xf32> to vector<2x16xf32>
    %44 = vector.extract_strided_slice %41 {offsets = [0, 16], sizes = [2, 16], strides = [1, 1]} : vector<2x64xf32> to vector<2x16xf32>
    %45 = vector.extract_strided_slice %42 {offsets = [0, 32], sizes = [2, 16], strides = [1, 1]} : vector<2x64xf32> to vector<2x16xf32>
    %46 = vector.extract_strided_slice %41 {offsets = [0, 48], sizes = [2, 16], strides = [1, 1]} : vector<2x64xf32> to vector<2x16xf32>
    %47 = arith.mulf %44, %29 : vector<2x16xf32>
    %48 = arith.mulf %43, %45 : vector<2x16xf32>
    %49 = arith.addf %47, %48 : vector<2x16xf32>
    %50 = math.tanh %49 : vector<2x16xf32>
    %51 = arith.mulf %46, %50 : vector<2x16xf32>
    %52 = vector.extract_strided_slice %7 {offsets = [4, 0], sizes = [2, 64], strides = [1, 1]} : vector<16x128xf32> to vector<2x64xf32>
    %53 = vector.broadcast %9 : vector<1x64xf32> to vector<2x64xf32>
    %54 = arith.addf %52, %53 : vector<2x64xf32>
    %cst_13 = arith.constant dense<0.000000e+00> : vector<2x64xf32>
    %55 = tpu.matmul %51, %8, %cst_13 {dimension_numbers = #tpu.dot_dimension_numbers<[1], [0], [0], [1], [0, 0, 1, 1], [], []>} : vector<2x16xf32>, vector<16x64xf32>, vector<2x64xf32> -> vector<2x64xf32>
    %56 = arith.addf %54, %55 : vector<2x64xf32>
    %57 = arith.negf %56 : vector<2x64xf32>
    %58 = math.exp %57 : vector<2x64xf32>
    %cst_14 = arith.constant 1.000000e+00 : f32
    %59 = vector.broadcast %cst_14 : f32 to vector<2x64xf32>
    %60 = arith.addf %59, %58 : vector<2x64xf32>
    %61 = arith.divf %59, %60 : vector<2x64xf32>
    %62 = math.tanh %56 : vector<2x64xf32>
    %63 = vector.extract_strided_slice %61 {offsets = [0, 0], sizes = [2, 16], strides = [1, 1]} : vector<2x64xf32> to vector<2x16xf32>
    %64 = vector.extract_strided_slice %61 {offsets = [0, 16], sizes = [2, 16], strides = [1, 1]} : vector<2x64xf32> to vector<2x16xf32>
    %65 = vector.extract_strided_slice %62 {offsets = [0, 32], sizes = [2, 16], strides = [1, 1]} : vector<2x64xf32> to vector<2x16xf32>
    %66 = vector.extract_strided_slice %61 {offsets = [0, 48], sizes = [2, 16], strides = [1, 1]} : vector<2x64xf32> to vector<2x16xf32>
    %67 = arith.mulf %64, %49 : vector<2x16xf32>
    %68 = arith.mulf %63, %65 : vector<2x16xf32>
    %69 = arith.addf %67, %68 : vector<2x16xf32>
    %70 = math.tanh %69 : vector<2x16xf32>
    %71 = arith.mulf %66, %70 : vector<2x16xf32>
    %72 = vector.extract_strided_slice %7 {offsets = [6, 0], sizes = [2, 64], strides = [1, 1]} : vector<16x128xf32> to vector<2x64xf32>
    %73 = vector.broadcast %9 : vector<1x64xf32> to vector<2x64xf32>
    %74 = arith.addf %72, %73 : vector<2x64xf32>
    %cst_15 = arith.constant dense<0.000000e+00> : vector<2x64xf32>
    %75 = tpu.matmul %71, %8, %cst_15 {dimension_numbers = #tpu.dot_dimension_numbers<[1], [0], [0], [1], [0, 0, 1, 1], [], []>} : vector<2x16xf32>, vector<16x64xf32>, vector<2x64xf32> -> vector<2x64xf32>
    %76 = arith.addf %74, %75 : vector<2x64xf32>
    %77 = arith.negf %76 : vector<2x64xf32>
    %78 = math.exp %77 : vector<2x64xf32>
    %cst_16 = arith.constant 1.000000e+00 : f32
    %79 = vector.broadcast %cst_16 : f32 to vector<2x64xf32>
    %80 = arith.addf %79, %78 : vector<2x64xf32>
    %81 = arith.divf %79, %80 : vector<2x64xf32>
    %82 = math.tanh %76 : vector<2x64xf32>
    %83 = vector.extract_strided_slice %81 {offsets = [0, 0], sizes = [2, 16], strides = [1, 1]} : vector<2x64xf32> to vector<2x16xf32>
    %84 = vector.extract_strided_slice %81 {offsets = [0, 16], sizes = [2, 16], strides = [1, 1]} : vector<2x64xf32> to vector<2x16xf32>
    %85 = vector.extract_strided_slice %82 {offsets = [0, 32], sizes = [2, 16], strides = [1, 1]} : vector<2x64xf32> to vector<2x16xf32>
    %86 = vector.extract_strided_slice %81 {offsets = [0, 48], sizes = [2, 16], strides = [1, 1]} : vector<2x64xf32> to vector<2x16xf32>
    %87 = arith.mulf %84, %69 : vector<2x16xf32>
    %88 = arith.mulf %83, %85 : vector<2x16xf32>
    %89 = arith.addf %87, %88 : vector<2x16xf32>
    %90 = math.tanh %89 : vector<2x16xf32>
    %91 = arith.mulf %86, %90 : vector<2x16xf32>
    %92 = vector.extract_strided_slice %7 {offsets = [8, 0], sizes = [2, 64], strides = [1, 1]} : vector<16x128xf32> to vector<2x64xf32>
    %93 = vector.broadcast %9 : vector<1x64xf32> to vector<2x64xf32>
    %94 = arith.addf %92, %93 : vector<2x64xf32>
    %cst_17 = arith.constant dense<0.000000e+00> : vector<2x64xf32>
    %95 = tpu.matmul %91, %8, %cst_17 {dimension_numbers = #tpu.dot_dimension_numbers<[1], [0], [0], [1], [0, 0, 1, 1], [], []>} : vector<2x16xf32>, vector<16x64xf32>, vector<2x64xf32> -> vector<2x64xf32>
    %96 = arith.addf %94, %95 : vector<2x64xf32>
    %97 = arith.negf %96 : vector<2x64xf32>
    %98 = math.exp %97 : vector<2x64xf32>
    %cst_18 = arith.constant 1.000000e+00 : f32
    %99 = vector.broadcast %cst_18 : f32 to vector<2x64xf32>
    %100 = arith.addf %99, %98 : vector<2x64xf32>
    %101 = arith.divf %99, %100 : vector<2x64xf32>
    %102 = math.tanh %96 : vector<2x64xf32>
    %103 = vector.extract_strided_slice %101 {offsets = [0, 0], sizes = [2, 16], strides = [1, 1]} : vector<2x64xf32> to vector<2x16xf32>
    %104 = vector.extract_strided_slice %101 {offsets = [0, 16], sizes = [2, 16], strides = [1, 1]} : vector<2x64xf32> to vector<2x16xf32>
    %105 = vector.extract_strided_slice %102 {offsets = [0, 32], sizes = [2, 16], strides = [1, 1]} : vector<2x64xf32> to vector<2x16xf32>
    %106 = vector.extract_strided_slice %101 {offsets = [0, 48], sizes = [2, 16], strides = [1, 1]} : vector<2x64xf32> to vector<2x16xf32>
    %107 = arith.mulf %104, %89 : vector<2x16xf32>
    %108 = arith.mulf %103, %105 : vector<2x16xf32>
    %109 = arith.addf %107, %108 : vector<2x16xf32>
    %110 = math.tanh %109 : vector<2x16xf32>
    %111 = arith.mulf %106, %110 : vector<2x16xf32>
    %112 = vector.extract_strided_slice %7 {offsets = [10, 0], sizes = [2, 64], strides = [1, 1]} : vector<16x128xf32> to vector<2x64xf32>
    %113 = vector.broadcast %9 : vector<1x64xf32> to vector<2x64xf32>
    %114 = arith.addf %112, %113 : vector<2x64xf32>
    %cst_19 = arith.constant dense<0.000000e+00> : vector<2x64xf32>
    %115 = tpu.matmul %111, %8, %cst_19 {dimension_numbers = #tpu.dot_dimension_numbers<[1], [0], [0], [1], [0, 0, 1, 1], [], []>} : vector<2x16xf32>, vector<16x64xf32>, vector<2x64xf32> -> vector<2x64xf32>
    %116 = arith.addf %114, %115 : vector<2x64xf32>
    %117 = arith.negf %116 : vector<2x64xf32>
    %118 = math.exp %117 : vector<2x64xf32>
    %cst_20 = arith.constant 1.000000e+00 : f32
    %119 = vector.broadcast %cst_20 : f32 to vector<2x64xf32>
    %120 = arith.addf %119, %118 : vector<2x64xf32>
    %121 = arith.divf %119, %120 : vector<2x64xf32>
    %122 = math.tanh %116 : vector<2x64xf32>
    %123 = vector.extract_strided_slice %121 {offsets = [0, 0], sizes = [2, 16], strides = [1, 1]} : vector<2x64xf32> to vector<2x16xf32>
    %124 = vector.extract_strided_slice %121 {offsets = [0, 16], sizes = [2, 16], strides = [1, 1]} : vector<2x64xf32> to vector<2x16xf32>
    %125 = vector.extract_strided_slice %122 {offsets = [0, 32], sizes = [2, 16], strides = [1, 1]} : vector<2x64xf32> to vector<2x16xf32>
    %126 = vector.extract_strided_slice %121 {offsets = [0, 48], sizes = [2, 16], strides = [1, 1]} : vector<2x64xf32> to vector<2x16xf32>
    %127 = arith.mulf %124, %109 : vector<2x16xf32>
    %128 = arith.mulf %123, %125 : vector<2x16xf32>
    %129 = arith.addf %127, %128 : vector<2x16xf32>
    %130 = math.tanh %129 : vector<2x16xf32>
    %131 = arith.mulf %126, %130 : vector<2x16xf32>
    %132 = vector.extract_strided_slice %7 {offsets = [12, 0], sizes = [2, 64], strides = [1, 1]} : vector<16x128xf32> to vector<2x64xf32>
    %133 = vector.broadcast %9 : vector<1x64xf32> to vector<2x64xf32>
    %134 = arith.addf %132, %133 : vector<2x64xf32>
    %cst_21 = arith.constant dense<0.000000e+00> : vector<2x64xf32>
    %135 = tpu.matmul %131, %8, %cst_21 {dimension_numbers = #tpu.dot_dimension_numbers<[1], [0], [0], [1], [0, 0, 1, 1], [], []>} : vector<2x16xf32>, vector<16x64xf32>, vector<2x64xf32> -> vector<2x64xf32>
    %136 = arith.addf %134, %135 : vector<2x64xf32>
    %137 = arith.negf %136 : vector<2x64xf32>
    %138 = math.exp %137 : vector<2x64xf32>
    %cst_22 = arith.constant 1.000000e+00 : f32
    %139 = vector.broadcast %cst_22 : f32 to vector<2x64xf32>
    %140 = arith.addf %139, %138 : vector<2x64xf32>
    %141 = arith.divf %139, %140 : vector<2x64xf32>
    %142 = math.tanh %136 : vector<2x64xf32>
    %143 = vector.extract_strided_slice %141 {offsets = [0, 0], sizes = [2, 16], strides = [1, 1]} : vector<2x64xf32> to vector<2x16xf32>
    %144 = vector.extract_strided_slice %141 {offsets = [0, 16], sizes = [2, 16], strides = [1, 1]} : vector<2x64xf32> to vector<2x16xf32>
    %145 = vector.extract_strided_slice %142 {offsets = [0, 32], sizes = [2, 16], strides = [1, 1]} : vector<2x64xf32> to vector<2x16xf32>
    %146 = vector.extract_strided_slice %141 {offsets = [0, 48], sizes = [2, 16], strides = [1, 1]} : vector<2x64xf32> to vector<2x16xf32>
    %147 = arith.mulf %144, %129 : vector<2x16xf32>
    %148 = arith.mulf %143, %145 : vector<2x16xf32>
    %149 = arith.addf %147, %148 : vector<2x16xf32>
    %150 = math.tanh %149 : vector<2x16xf32>
    %151 = arith.mulf %146, %150 : vector<2x16xf32>
    %152 = vector.extract_strided_slice %7 {offsets = [14, 0], sizes = [2, 64], strides = [1, 1]} : vector<16x128xf32> to vector<2x64xf32>
    %153 = vector.broadcast %9 : vector<1x64xf32> to vector<2x64xf32>
    %154 = arith.addf %152, %153 : vector<2x64xf32>
    %cst_23 = arith.constant dense<0.000000e+00> : vector<2x64xf32>
    %155 = tpu.matmul %151, %8, %cst_23 {dimension_numbers = #tpu.dot_dimension_numbers<[1], [0], [0], [1], [0, 0, 1, 1], [], []>} : vector<2x16xf32>, vector<16x64xf32>, vector<2x64xf32> -> vector<2x64xf32>
    %156 = arith.addf %154, %155 : vector<2x64xf32>
    %157 = arith.negf %156 : vector<2x64xf32>
    %158 = math.exp %157 : vector<2x64xf32>
    %cst_24 = arith.constant 1.000000e+00 : f32
    %159 = vector.broadcast %cst_24 : f32 to vector<2x64xf32>
    %160 = arith.addf %159, %158 : vector<2x64xf32>
    %161 = arith.divf %159, %160 : vector<2x64xf32>
    %162 = math.tanh %156 : vector<2x64xf32>
    %163 = vector.extract_strided_slice %161 {offsets = [0, 0], sizes = [2, 16], strides = [1, 1]} : vector<2x64xf32> to vector<2x16xf32>
    %164 = vector.extract_strided_slice %161 {offsets = [0, 16], sizes = [2, 16], strides = [1, 1]} : vector<2x64xf32> to vector<2x16xf32>
    %165 = vector.extract_strided_slice %162 {offsets = [0, 32], sizes = [2, 16], strides = [1, 1]} : vector<2x64xf32> to vector<2x16xf32>
    %166 = vector.extract_strided_slice %161 {offsets = [0, 48], sizes = [2, 16], strides = [1, 1]} : vector<2x64xf32> to vector<2x16xf32>
    %167 = arith.mulf %164, %149 : vector<2x16xf32>
    %168 = arith.mulf %163, %165 : vector<2x16xf32>
    %169 = arith.addf %167, %168 : vector<2x16xf32>
    %170 = math.tanh %169 : vector<2x16xf32>
    %171 = arith.mulf %166, %170 : vector<2x16xf32>
    %172 = vector.extract_strided_slice %7 {offsets = [14, 64], sizes = [2, 64], strides = [1, 1]} : vector<16x128xf32> to vector<2x64xf32>
    %c0_25 = arith.constant 0 : index
    %c0_26 = arith.constant 0 : index
    %173 = vector.load %arg4[%c0_25, %c0_26] : memref<1x64xf32, #tpu.memory_space<vmem>>, vector<1x64xf32>
    %174 = vector.broadcast %173 : vector<1x64xf32> to vector<2x64xf32>
    %175 = arith.addf %172, %174 : vector<2x64xf32>
    %176 = arith.negf %175 : vector<2x64xf32>
    %177 = math.exp %176 : vector<2x64xf32>
    %cst_27 = arith.constant 1.000000e+00 : f32
    %178 = vector.broadcast %cst_27 : f32 to vector<2x64xf32>
    %179 = arith.addf %178, %177 : vector<2x64xf32>
    %180 = arith.divf %178, %179 : vector<2x64xf32>
    %181 = math.tanh %175 : vector<2x64xf32>
    %182 = vector.extract_strided_slice %180 {offsets = [0, 0], sizes = [2, 16], strides = [1, 1]} : vector<2x64xf32> to vector<2x16xf32>
    %183 = vector.extract_strided_slice %181 {offsets = [0, 32], sizes = [2, 16], strides = [1, 1]} : vector<2x64xf32> to vector<2x16xf32>
    %184 = vector.extract_strided_slice %180 {offsets = [0, 48], sizes = [2, 16], strides = [1, 1]} : vector<2x64xf32> to vector<2x16xf32>
    %185 = arith.mulf %182, %183 : vector<2x16xf32>
    %186 = math.tanh %185 : vector<2x16xf32>
    %187 = arith.mulf %184, %186 : vector<2x16xf32>
    %188 = tpu.concatenate %171, %187 in 1 : vector<2x16xf32>, vector<2x16xf32> -> vector<2x32xf32>
    %c0_28 = arith.constant 0 : index
    %c0_29 = arith.constant 0 : index
    %189 = vector.load %arg5[%c0_28, %c0_29] : memref<32x10xf32, #tpu.memory_space<vmem>>, vector<32x10xf32>
    %cst_30 = arith.constant dense<0.000000e+00> : vector<2x10xf32>
    %190 = tpu.matmul %188, %189, %cst_30 {dimension_numbers = #tpu.dot_dimension_numbers<[1], [0], [0], [1], [0, 0, 1, 1], [], []>} : vector<2x32xf32>, vector<32x10xf32>, vector<2x10xf32> -> vector<2x10xf32>
    %c0_31 = arith.constant 0 : index
    %c0_32 = arith.constant 0 : index
    %191 = vector.load %arg6[%c0_31, %c0_32] : memref<1x10xf32, #tpu.memory_space<vmem>>, vector<1x10xf32>
    %192 = vector.broadcast %191 : vector<1x10xf32> to vector<2x10xf32>
    %193 = arith.addf %190, %192 : vector<2x10xf32>
    %cst_33 = arith.constant 0.000000e+00 : f32
    %194 = vector.broadcast %cst_33 : f32 to vector<2x10xf32>
    %195 = arith.maximumf %193, %194 : vector<2x10xf32>
    %c0_34 = arith.constant 0 : index
    %c0_35 = arith.constant 0 : index
    %196 = vector.load %arg7[%c0_34, %c0_35] : memref<10x3xf32, #tpu.memory_space<vmem>>, vector<10x3xf32>
    %cst_36 = arith.constant dense<0.000000e+00> : vector<2x3xf32>
    %197 = tpu.matmul %195, %196, %cst_36 {dimension_numbers = #tpu.dot_dimension_numbers<[1], [0], [0], [1], [0, 0, 1, 1], [], []>} : vector<2x10xf32>, vector<10x3xf32>, vector<2x3xf32> -> vector<2x3xf32>
    %c0_37 = arith.constant 0 : index
    %c0_38 = arith.constant 0 : index
    %198 = vector.load %arg8[%c0_37, %c0_38] : memref<1x3xf32, #tpu.memory_space<vmem>>, vector<1x3xf32>
    %199 = vector.broadcast %198 : vector<1x3xf32> to vector<2x3xf32>
    %200 = arith.addf %197, %199 : vector<2x3xf32>
    %c0_39 = arith.constant 0 : index
    %c0_40 = arith.constant 0 : index
    %201 = vector.load %arg9[%c0_39, %c0_40] : memref<2x3xf32, #tpu.memory_space<vmem>>, vector<2x3xf32>
    tpu.vector_store %arg9[%c0_39, %c0_40], %200 {strides = array<i32>} : memref<2x3xf32, #tpu.memory_space<vmem>>, vector<2x3xf32>,
    return
  }
}

</mosaic_0001>

<llo_original>
// kernel: tpu_custom_call.1
$region0: #{tpu_custom_call.1}
  #allocation0 [shape = 'u32[]', space=smem, size = 0x4, offset = 0x4, fixed_abs, tag = 'smem constant byte address 0x4 - core index']
  #allocation1 [shape = 'u32[144,128]{1,0:T(1,128)}', space=vmem, size = 0x12000, scoped, tag = 'internal scratch']
  %s0 = inlined_call_operand.vmem [shape: s32[16,1], index: 0, kind: input, shape index: {}]
  %s1 = inlined_call_operand.hbm [shape: f32[1000,128], index: 1, kind: input, shape index: {}]
  %s2 = inlined_call_operand.vmem [shape: f32[16,64], index: 2, kind: input, shape index: {}]
  %s3 = inlined_call_operand.vmem [shape: f32[1,64], index: 3, kind: input, shape index: {}]
  %s4 = inlined_call_operand.vmem [shape: f32[1,64], index: 4, kind: input, shape index: {}]
  %s5 = inlined_call_operand.vmem [shape: f32[32,10], index: 5, kind: input, shape index: {}]
  %s6 = inlined_call_operand.vmem [shape: f32[1,10], index: 6, kind: input, shape index: {}]
  %s7 = inlined_call_operand.vmem [shape: f32[10,3], index: 7, kind: input, shape index: {}]
  %s8 = inlined_call_operand.vmem [shape: f32[1,3], index: 8, kind: input, shape index: {}]
  %s9 = inlined_call_operand.hbm [shape: f32[2,3], index: 9, kind: output, shape index: {}]
  %s10 = sld [smem:[#allocation0]]
  $region50: #{tpu_custom_call.1} parent=0
    _
  %s12 = ssub.s32 1, %s10
  %s13 = scalar_select 0, %s12, %s10
  $region1: #{tpu_custom_call.1} parent=0
    #allocation2 [shape = 'u8[512000]{0}', space=vmem, size = 0x7d000, scoped, tag = 'input window, operand 1, single buffered']
    #allocation3 [shape = 's32[1]{0}', space=sflag, size = 0x4, scoped, tag = 'scoped memory for tpu_custom_call.1']
    #allocation4 [shape = 's32[1]{0}', space=sflag, size = 0x4, scoped, tag = 'scoped memory for tpu_custom_call.1']
    #allocation5 [shape = 'u8[1024]{0}', space=vmem, size = 0x400, scoped, tag = 'output window, operand 0, single buffered']
    %14 = vsyncpa [#allocation3], 0
    %15 = vsyncpa [#allocation4], 0
    // Predicated region
    $region2: #{tpu_custom_call.1} parent=1 // pred_check
      _
    $region3: #{tpu_custom_call.1} parent=1 // pred_check_branch
      %17 = sbr.rel (0) target = $region5
    $region4: #{tpu_custom_call.1} parent=1 // pred_region
      _
    $region5: #{tpu_custom_call.1} parent=1 // pred_fallthru
      _
    // Predicated region
    $region6: #{tpu_custom_call.1} parent=1 // pred_check
      _
    $region7: #{tpu_custom_call.1} parent=1 // pred_check_branch
      %19 = sbr.rel (0) target = $region9
    $region8: #{tpu_custom_call.1} parent=1 // pred_region
      %s21 = ssub.s32 16000, 16000
      %22 = vsyncadd [#allocation3], %s21
      %s23 = sshll.u32 [#allocation2], 4
      %s24 = int_to_ptr.vmem [resolvable:$true] %s23
      %29 = dma.hbm_to_vmem [thread:$0]  %s1, 16000, %s24, [#allocation3], 128, 128, 8
    $region9: #{tpu_custom_call.1} parent=1 // pred_fallthru
      _
    // Predicated region
    $region10: #{tpu_custom_call.1} parent=1 // pred_check
      _
    $region11: #{tpu_custom_call.1} parent=1 // pred_check_branch
      %31 = sbr.rel (0) target = $region13
    $region12: #{tpu_custom_call.1} parent=1 // pred_region
      _
    $region13: #{tpu_custom_call.1} parent=1 // pred_fallthru
      _
    // Predicated region
    $region14: #{tpu_custom_call.1} parent=1 // pred_check
      _
    $region15: #{tpu_custom_call.1} parent=1 // pred_check_branch
      %33 = sbr.rel (0) target = $region17
    $region16: #{tpu_custom_call.1} parent=1 // pred_region
      _
    $region17: #{tpu_custom_call.1} parent=1 // pred_fallthru
      _
    // Predicated region
    $region18: #{tpu_custom_call.1} parent=1 // pred_check
      _
    $region19: #{tpu_custom_call.1} parent=1 // pred_check_branch
      %35 = sbr.rel (0) target = $region21
    $region20: #{tpu_custom_call.1} parent=1 // pred_region
      _
    $region21: #{tpu_custom_call.1} parent=1 // pred_fallthru
      _
    // Predicated region
    $region22: #{tpu_custom_call.1} parent=1 // pred_check
      _
    $region23: #{tpu_custom_call.1} parent=1 // pred_check_branch
      %37 = sbr.rel (0) target = $region25
    $region24: #{tpu_custom_call.1} parent=1 // pred_region
      _
    $region25: #{tpu_custom_call.1} parent=1 // pred_fallthru
      _
    // Predicated region
    $region26: #{tpu_custom_call.1} parent=1 // pred_check
      _
    $region27: #{tpu_custom_call.1} parent=1 // pred_check_branch
      %39 = sbr.rel (0) target = $region29
    $region28: #{tpu_custom_call.1} parent=1 // pred_region
      _
    $region29: #{tpu_custom_call.1} parent=1 // pred_fallthru
      _
    // Predicated region
    $region30: #{tpu_custom_call.1} parent=1 // pred_check
      _
    $region31: #{tpu_custom_call.1} parent=1 // pred_check_branch
      %41 = sbr.rel (0) target = $region33
    $region32: #{tpu_custom_call.1} parent=1 // pred_region
      _
    $region33: #{tpu_custom_call.1} parent=1 // pred_fallthru
      _
    // Predicated region
    $region34: #{tpu_custom_call.1} parent=1 // pred_check
      _
    $region35: #{tpu_custom_call.1} parent=1 // pred_check_branch
      %43 = sbr.rel (0) target = $region37
    $region36: #{tpu_custom_call.1} parent=1 // pred_region
      _
    $region37: #{tpu_custom_call.1} parent=1 // pred_fallthru
      _
    // Predicated region
    $region38: #{tpu_custom_call.1} parent=1 // pred_check
      _
    $region39: #{tpu_custom_call.1} parent=1 // pred_check_branch
      %45 = sbr.rel (0) target = $region41
    $region40: #{tpu_custom_call.1} parent=1 // pred_region
      %46 = dma.done [#allocation3], 16000
    $region41: #{tpu_custom_call.1} parent=1 // pred_fallthru
      _
    %v47 = vld [vmem:[%s0] sm:$0xff]
    %v48 = vld [vmem:[%s0 + $0x8] sm:$0xff]
    %v49 = vlaneseq
    %v50 = vand.u32 %v49, 127
    %v51 = vadd.s32 %v50, 128
    %v52 = vadd.s32 %v50, 256
    %v53 = vadd.s32 %v50, 384
    %v54 = vadd.s32 %v50, 512
    %v55 = vadd.s32 %v50, 640
    %v56 = vadd.s32 %v50, 768
    %v57 = vadd.s32 %v50, 896
    %58 = vset.pattern.permute.xlu0 0
    %59 = vperm.xlu0 %58, %v47
    %v60 = vpop.permute.xlu0 %59
    %61 = vset.pattern.permute.xlu0 0
    %62 = vperm.xlu0 %61, %v48
    %v63 = vpop.permute.xlu0 %62
    %vm64 = vcmp.eq.s32.totalorder %v50, %v60
    %vm65 = vcmp.eq.s32.totalorder %v51, %v60
    %vm66 = vcmp.eq.s32.totalorder %v52, %v60
    %vm67 = vcmp.eq.s32.totalorder %v53, %v60
    %vm68 = vcmp.eq.s32.totalorder %v54, %v60
    %vm69 = vcmp.eq.s32.totalorder %v55, %v60
    %vm70 = vcmp.eq.s32.totalorder %v56, %v60
    %vm71 = vcmp.eq.s32.totalorder %v57, %v60
    %vm72 = vcmp.eq.s32.totalorder %v50, %v63
    %vm73 = vcmp.eq.s32.totalorder %v51, %v63
    %vm74 = vcmp.eq.s32.totalorder %v52, %v63
    %vm75 = vcmp.eq.s32.totalorder %v53, %v63
    %vm76 = vcmp.eq.s32.totalorder %v54, %v63
    %vm77 = vcmp.eq.s32.totalorder %v55, %v63
    %vm78 = vcmp.eq.s32.totalorder %v56, %v63
    %vm79 = vcmp.eq.s32.totalorder %v57, %v63
    %v80 = vsel %vm64, 1, 0
    %v81 = vsel %vm65, 1, 0
    %v82 = vsel %vm66, 1, 0
    %v83 = vsel %vm67, 1, 0
    %v84 = vsel %vm68, 1, 0
    %v85 = vsel %vm69, 1, 0
    %v86 = vsel %vm70, 1, 0
    %v87 = vsel %vm71, 1, 0
    %v88 = vsel %vm72, 1, 0
    %v89 = vsel %vm73, 1, 0
    %v90 = vsel %vm74, 1, 0
    %v91 = vsel %vm75, 1, 0
    %v92 = vsel %vm76, 1, 0
    %v93 = vsel %vm77, 1, 0
    %v94 = vsel %vm78, 1, 0
    %v95 = vsel %vm79, 1, 0
    %v96 = vcvt.s32.f32 %v80
    %v97 = vcvt.s32.f32 %v81
    %v98 = vcvt.s32.f32 %v82
    %v99 = vcvt.s32.f32 %v83
    %v100 = vcvt.s32.f32 %v84
    %v101 = vcvt.s32.f32 %v85
    %v102 = vcvt.s32.f32 %v86
    %v103 = vcvt.s32.f32 %v87
    %v104 = vcvt.s32.f32 %v88
    %v105 = vcvt.s32.f32 %v89
    %v106 = vcvt.s32.f32 %v90
    %v107 = vcvt.s32.f32 %v91
    %v108 = vcvt.s32.f32 %v92
    %v109 = vcvt.s32.f32 %v93
    %v110 = vcvt.s32.f32 %v94
    %v111 = vcvt.s32.f32 %v95
    %v112 = vld [vmem:[#allocation2] sm:$0xff]
    %v113 = vld [vmem:[#allocation2 + $0x8] sm:$0xff]
    %v114 = vld [vmem:[#allocation2 + $0x10] sm:$0xff]
    %v115 = vld [vmem:[#allocation2 + $0x18] sm:$0xff]
    %v116 = vld [vmem:[#allocation2 + $0x20] sm:$0xff]
    %v117 = vld [vmem:[#allocation2 + $0x28] sm:$0xff]
    %v118 = vld [vmem:[#allocation2 + $0x30] sm:$0xff]
    %v119 = vld [vmem:[#allocation2 + $0x38] sm:$0xff]
    %v120 = vld [vmem:[#allocation2 + $0x40] sm:$0xff]
    %v121 = vld [vmem:[#allocation2 + $0x48] sm:$0xff]
    %v122 = vld [vmem:[#allocation2 + $0x50] sm:$0xff]
    %v123 = vld [vmem:[#allocation2 + $0x58] sm:$0xff]
    %v124 = vld [vmem:[#allocation2 + $0x60] sm:$0xff]
    %v125 = vld [vmem:[#allocation2 + $0x68] sm:$0xff]
    %v126 = vld [vmem:[#allocation2 + $0x70] sm:$0xff]
    %v127 = vld [vmem:[#allocation2 + $0x78] sm:$0xff]
    %v128 = vld [vmem:[#allocation2 + $0x80] sm:$0xff]
    %v129 = vld [vmem:[#allocation2 + $0x88] sm:$0xff]
    %v130 = vld [vmem:[#allocation2 + $0x90] sm:$0xff]
    %v131 = vld [vmem:[#allocation2 + $0x98] sm:$0xff]
    %v132 = vld [vmem:[#allocation2 + $0xa0] sm:$0xff]
    %v133 = vld [vmem:[#allocation2 + $0xa8] sm:$0xff]
    %v134 = vld [vmem:[#allocation2 + $0xb0] sm:$0xff]
    %v135 = vld [vmem:[#allocation2 + $0xb8] sm:$0xff]
    %v136 = vld [vmem:[#allocation2 + $0xc0] sm:$0xff]
    %v137 = vld [vmem:[#allocation2 + $0xc8] sm:$0xff]
    %v138 = vld [vmem:[#allocation2 + $0xd0] sm:$0xff]
    %v139 = vld [vmem:[#allocation2 + $0xd8] sm:$0xff]
    %v140 = vld [vmem:[#allocation2 + $0xe0] sm:$0xff]
    %v141 = vld [vmem:[#allocation2 + $0xe8] sm:$0xff]
    %v142 = vld [vmem:[#allocation2 + $0xf0] sm:$0xff]
    %v143 = vld [vmem:[#allocation2 + $0xf8] sm:$0xff]
    %v144 = vld [vmem:[#allocation2 + $0x100] sm:$0xff]
    %v145 = vld [vmem:[#allocation2 + $0x108] sm:$0xff]
    %v146 = vld [vmem:[#allocation2 + $0x110] sm:$0xff]
    %v147 = vld [vmem:[#allocation2 + $0x118] sm:$0xff]
    %v148 = vld [vmem:[#allocation2 + $0x120] sm:$0xff]
    %v149 = vld [vmem:[#allocation2 + $0x128] sm:$0xff]
    %v150 = vld [vmem:[#allocation2 + $0x130] sm:$0xff]
    %v151 = vld [vmem:[#allocation2 + $0x138] sm:$0xff]
    %v152 = vld [vmem:[#allocation2 + $0x140] sm:$0xff]
    %v153 = vld [vmem:[#allocation2 + $0x148] sm:$0xff]
    %v154 = vld [vmem:[#allocation2 + $0x150] sm:$0xff]
    %v155 = vld [vmem:[#allocation2 + $0x158] sm:$0xff]
    %v156 = vld [vmem:[#allocation2 + $0x160] sm:$0xff]
    %v157 = vld [vmem:[#allocation2 + $0x168] sm:$0xff]
    %v158 = vld [vmem:[#allocation2 + $0x170] sm:$0xff]
    %v159 = vld [vmem:[#allocation2 + $0x178] sm:$0xff]
    %v160 = vld [vmem:[#allocation2 + $0x180] sm:$0xff]
    %v161 = vld [vmem:[#allocation2 + $0x188] sm:$0xff]
    %v162 = vld [vmem:[#allocation2 + $0x190] sm:$0xff]
    %v163 = vld [vmem:[#allocation2 + $0x198] sm:$0xff]
    %v164 = vld [vmem:[#allocation2 + $0x1a0] sm:$0xff]
    %v165 = vld [vmem:[#allocation2 + $0x1a8] sm:$0xff]
    %v166 = vld [vmem:[#allocation2 + $0x1b0] sm:$0xff]
    %v167 = vld [vmem:[#allocation2 + $0x1b8] sm:$0xff]
    %v168 = vld [vmem:[#allocation2 + $0x1c0] sm:$0xff]
    %v169 = vld [vmem:[#allocation2 + $0x1c8] sm:$0xff]
    %v170 = vld [vmem:[#allocation2 + $0x1d0] sm:$0xff]
    %v171 = vld [vmem:[#allocation2 + $0x1d8] sm:$0xff]
    %v172 = vld [vmem:[#allocation2 + $0x1e0] sm:$0xff]
    %v173 = vld [vmem:[#allocation2 + $0x1e8] sm:$0xff]
    %v174 = vld [vmem:[#allocation2 + $0x1f0] sm:$0xff]
    %v175 = vld [vmem:[#allocation2 + $0x1f8] sm:$0xff]
    %v176 = vld [vmem:[#allocation2 + $0x200] sm:$0xff]
    %v177 = vld [vmem:[#allocation2 + $0x208] sm:$0xff]
    %v178 = vld [vmem:[#allocation2 + $0x210] sm:$0xff]
    %v179 = vld [vmem:[#allocation2 + $0x218] sm:$0xff]
    %v180 = vld [vmem:[#allocation2 + $0x220] sm:$0xff]
    %v181 = vld [vmem:[#allocation2 + $0x228] sm:$0xff]
    %v182 = vld [vmem:[#allocation2 + $0x230] sm:$0xff]
    %v183 = vld [vmem:[#allocation2 + $0x238] sm:$0xff]
    %v184 = vld [vmem:[#allocation2 + $0x240] sm:$0xff]
    %v185 = vld [vmem:[#allocation2 + $0x248] sm:$0xff]
    %v186 = vld [vmem:[#allocation2 + $0x250] sm:$0xff]
    %v187 = vld [vmem:[#allocation2 + $0x258] sm:$0xff]
    %v188 = vld [vmem:[#allocation2 + $0x260] sm:$0xff]
    %v189 = vld [vmem:[#allocation2 + $0x268] sm:$0xff]
    %v190 = vld [vmem:[#allocation2 + $0x270] sm:$0xff]
    %v191 = vld [vmem:[#allocation2 + $0x278] sm:$0xff]
    %v192 = vld [vmem:[#allocation2 + $0x280] sm:$0xff]
    %v193 = vld [vmem:[#allocation2 + $0x288] sm:$0xff]
    %v194 = vld [vmem:[#allocation2 + $0x290] sm:$0xff]
    %v195 = vld [vmem:[#allocation2 + $0x298] sm:$0xff]
    %v196 = vld [vmem:[#allocation2 + $0x2a0] sm:$0xff]
    %v197 = vld [vmem:[#allocation2 + $0x2a8] sm:$0xff]
    %v198 = vld [vmem:[#allocation2 + $0x2b0] sm:$0xff]
    %v199 = vld [vmem:[#allocation2 + $0x2b8] sm:$0xff]
    %v200 = vld [vmem:[#allocation2 + $0x2c0] sm:$0xff]
    %v201 = vld [vmem:[#allocation2 + $0x2c8] sm:$0xff]
    %v202 = vld [vmem:[#allocation2 + $0x2d0] sm:$0xff]
    %v203 = vld [vmem:[#allocation2 + $0x2d8] sm:$0xff]
    %v204 = vld [vmem:[#allocation2 + $0x2e0] sm:$0xff]
    %v205 = vld [vmem:[#allocation2 + $0x2e8] sm:$0xff]
    %v206 = vld [vmem:[#allocation2 + $0x2f0] sm:$0xff]
    %v207 = vld [vmem:[#allocation2 + $0x2f8] sm:$0xff]
    %v208 = vld [vmem:[#allocation2 + $0x300] sm:$0xff]
    %v209 = vld [vmem:[#allocation2 + $0x308] sm:$0xff]
    %v210 = vld [vmem:[#allocation2 + $0x310] sm:$0xff]
    %v211 = vld [vmem:[#allocation2 + $0x318] sm:$0xff]
    %v212 = vld [vmem:[#allocation2 + $0x320] sm:$0xff]
    %v213 = vld [vmem:[#allocation2 + $0x328] sm:$0xff]
    %v214 = vld [vmem:[#allocation2 + $0x330] sm:$0xff]
    %v215 = vld [vmem:[#allocation2 + $0x338] sm:$0xff]
    %v216 = vld [vmem:[#allocation2 + $0x340] sm:$0xff]
    %v217 = vld [vmem:[#allocation2 + $0x348] sm:$0xff]
    %v218 = vld [vmem:[#allocation2 + $0x350] sm:$0xff]
    %v219 = vld [vmem:[#allocation2 + $0x358] sm:$0xff]
    %v220 = vld [vmem:[#allocation2 + $0x360] sm:$0xff]
    %v221 = vld [vmem:[#allocation2 + $0x368] sm:$0xff]
    %v222 = vld [vmem:[#allocation2 + $0x370] sm:$0xff]
    %v223 = vld [vmem:[#allocation2 + $0x378] sm:$0xff]
    %v224 = vld [vmem:[#allocation2 + $0x380] sm:$0xff]
    %v225 = vld [vmem:[#allocation2 + $0x388] sm:$0xff]
    %v226 = vld [vmem:[#allocation2 + $0x390] sm:$0xff]
    %v227 = vld [vmem:[#allocation2 + $0x398] sm:$0xff]
    %v228 = vld [vmem:[#allocation2 + $0x3a0] sm:$0xff]
    %v229 = vld [vmem:[#allocation2 + $0x3a8] sm:$0xff]
    %v230 = vld [vmem:[#allocation2 + $0x3b0] sm:$0xff]
    %v231 = vld [vmem:[#allocation2 + $0x3b8] sm:$0xff]
    %v232 = vld [vmem:[#allocation2 + $0x3c0] sm:$0xff]
    %v233 = vld [vmem:[#allocation2 + $0x3c8] sm:$0xff]
    %v234 = vld [vmem:[#allocation2 + $0x3d0] sm:$0xff]
    %v235 = vld [vmem:[#allocation2 + $0x3d8] sm:$0xff]
    %v236 = vld [vmem:[#allocation2 + $0x3e0] sm:$0xff]
    %vm237 = vcmask 850944
    %v239 = vsel %vm237, %v103, 0
    %v242 = vsel %vm237, %v111, 0
    %244 = vmatprep.subr.mxu0 0.0
    %245 = vmatpush1.msra.mxu0 %v112
    %246 = vmatprep.subr.mxu0 0.0
    %247 = vmatpush1.msra.mxu0 %v113
    %248 = vmatprep.subr.mxu0 0.0
    %249 = vmatpush1.msra.mxu0 %v114
    %250 = vmatprep.subr.mxu0 0.0
    %251 = vmatpush1.msra.mxu0 %v115
    %252 = vmatprep.subr.mxu0 0.0
    %253 = vmatpush1.msra.mxu0 %v116
    %254 = vmatprep.subr.mxu0 0.0
    %255 = vmatpush1.msra.mxu0 %v117
    %256 = vmatprep.subr.mxu0 0.0
    %257 = vmatpush1.msra.mxu0 %v118
    %258 = vmatprep.subr.mxu0 0.0
    %259 = vmatpush1.msra.mxu0 %v119
    %260 = vmatprep.subr.mxu0 0.0
    %261 = vmatpush1.msra.mxu0 %v120
    %262 = vmatprep.subr.mxu0 0.0
    %263 = vmatpush1.msra.mxu0 %v121
    %264 = vmatprep.subr.mxu0 0.0
    %265 = vmatpush1.msra.mxu0 %v122
    %266 = vmatprep.subr.mxu0 0.0
    %267 = vmatpush1.msra.mxu0 %v123
    %268 = vmatprep.subr.mxu0 0.0
    %269 = vmatpush1.msra.mxu0 %v124
    %270 = vmatprep.subr.mxu0 0.0
    %271 = vmatpush1.msra.mxu0 %v125
    %272 = vmatprep.subr.mxu0 0.0
    %273 = vmatpush1.msra.mxu0 %v126
    %274 = vmatprep.subr.mxu0 0.0
    %275 = vmatpush1.msra.mxu0 %v127
    %276 = vmatprep.subr.mxu0 0.0
    %277 = vmatpush1.msra.mxu0 %v128
    %278 = vmatprep.subr.mxu0 0.0
    %279 = vmatpush1.msra.mxu0 %v129
    %280 = vmatprep.subr.mxu0 0.0
    %281 = vmatpush1.msra.mxu0 %v130
    %282 = vmatprep.subr.mxu0 0.0
    %283 = vmatpush1.msra.mxu0 %v131
    %284 = vmatprep.subr.mxu0 0.0
    %285 = vmatpush1.msra.mxu0 %v132
    %286 = vmatprep.subr.mxu0 0.0
    %287 = vmatpush1.msra.mxu0 %v133
    %288 = vmatprep.subr.mxu0 0.0
    %289 = vmatpush1.msra.mxu0 %v134
    %290 = vmatprep.subr.mxu0 0.0
    %291 = vmatpush1.msra.mxu0 %v135
    %292 = vmatprep.subr.mxu0 0.0
    %293 = vmatpush1.msra.mxu0 %v136
    %294 = vmatprep.subr.mxu0 0.0
    %295 = vmatpush1.msra.mxu0 %v137
    %296 = vmatprep.subr.mxu0 0.0
    %297 = vmatpush1.msra.mxu0 %v138
    %298 = vmatprep.subr.mxu0 0.0
    %299 = vmatpush1.msra.mxu0 %v139
    %300 = vmatprep.subr.mxu0 0.0
    %301 = vmatpush1.msra.mxu0 %v140
    %302 = vmatprep.subr.mxu0 0.0
    %303 = vmatpush1.msra.mxu0 %v141
    %304 = vmatprep.subr.mxu0 0.0
    %305 = vmatpush1.msra.mxu0 %v142
    %306 = vmatprep.subr.mxu0 0.0
    %307 = vmatpush1.msra.mxu0 %v143
    %308 = vmatprep.mubr.f32.mxu0 %v97
    %309 = vmatmul.mubr.f32.gmra.mrb[0].mxu0 %v96
    %v310 = vpop.f32.mrb[0].mxu0
    %v311 = vadd.f32 0.0, %v310
    %v312 = vpop.f32.mrb[0].mxu0
    %313 = vmatprep.mubr.f32.mxu0 %v105
    %314 = vmatmul.mubr.f32.gmra.mrb[0].mxu0 %v104
    %v315 = vpop.f32.mrb[0].mxu0
    %v316 = vadd.f32 0.0, %v315
    %v317 = vpop.f32.mrb[0].mxu0
    %318 = vdwg.mxu0
    %319 = vmatprep.subr.mxu0 0.0
    %320 = vmatpush1.msra.mxu0 %v144
    %321 = vmatprep.subr.mxu0 0.0
    %322 = vmatpush1.msra.mxu0 %v145
    %323 = vmatprep.subr.mxu0 0.0
    %324 = vmatpush1.msra.mxu0 %v146
    %325 = vmatprep.subr.mxu0 0.0
    %326 = vmatpush1.msra.mxu0 %v147
    %327 = vmatprep.subr.mxu0 0.0
    %328 = vmatpush1.msra.mxu0 %v148
    %329 = vmatprep.subr.mxu0 0.0
    %330 = vmatpush1.msra.mxu0 %v149
    %331 = vmatprep.subr.mxu0 0.0
    %332 = vmatpush1.msra.mxu0 %v150
    %333 = vmatprep.subr.mxu0 0.0
    %334 = vmatpush1.msra.mxu0 %v151
    %335 = vmatprep.subr.mxu0 0.0
    %336 = vmatpush1.msra.mxu0 %v152
    %337 = vmatprep.subr.mxu0 0.0
    %338 = vmatpush1.msra.mxu0 %v153
    %339 = vmatprep.subr.mxu0 0.0
    %340 = vmatpush1.msra.mxu0 %v154
    %341 = vmatprep.subr.mxu0 0.0
    %342 = vmatpush1.msra.mxu0 %v155
    %343 = vmatprep.subr.mxu0 0.0
    %344 = vmatpush1.msra.mxu0 %v156
    %345 = vmatprep.subr.mxu0 0.0
    %346 = vmatpush1.msra.mxu0 %v157
    %347 = vmatprep.subr.mxu0 0.0
    %348 = vmatpush1.msra.mxu0 %v158
    %349 = vmatprep.subr.mxu0 0.0
    %350 = vmatpush1.msra.mxu0 %v159
    %351 = vmatprep.subr.mxu0 0.0
    %352 = vmatpush1.msra.mxu0 %v160
    %353 = vmatprep.subr.mxu0 0.0
    %354 = vmatpush1.msra.mxu0 %v161
    %355 = vmatprep.subr.mxu0 0.0
    %356 = vmatpush1.msra.mxu0 %v162
    %357 = vmatprep.subr.mxu0 0.0
    %358 = vmatpush1.msra.mxu0 %v163
    %359 = vmatprep.subr.mxu0 0.0
    %360 = vmatpush1.msra.mxu0 %v164
    %361 = vmatprep.subr.mxu0 0.0
    %362 = vmatpush1.msra.mxu0 %v165
    %363 = vmatprep.subr.mxu0 0.0
    %364 = vmatpush1.msra.mxu0 %v166
    %365 = vmatprep.subr.mxu0 0.0
    %366 = vmatpush1.msra.mxu0 %v167
    %367 = vmatprep.subr.mxu0 0.0
    %368 = vmatpush1.msra.mxu0 %v168
    %369 = vmatprep.subr.mxu0 0.0
    %370 = vmatpush1.msra.mxu0 %v169
    %371 = vmatprep.subr.mxu0 0.0
    %372 = vmatpush1.msra.mxu0 %v170
    %373 = vmatprep.subr.mxu0 0.0
    %374 = vmatpush1.msra.mxu0 %v171
    %375 = vmatprep.subr.mxu0 0.0
    %376 = vmatpush1.msra.mxu0 %v172
    %377 = vmatprep.subr.mxu0 0.0
    %378 = vmatpush1.msra.mxu0 %v173
    %379 = vmatprep.subr.mxu0 0.0
    %380 = vmatpush1.msra.mxu0 %v174
    %381 = vmatprep.subr.mxu0 0.0
    %382 = vmatpush1.msra.mxu0 %v175
    %383 = vmatprep.mubr.f32.mxu0 %v99
    %384 = vmatmul.mubr.f32.gmra.mrb[0].mxu0 %v98
    %v385 = vpop.f32.mrb[0].mxu0
    %v386 = vadd.f32 %v311, %v385
    %v387 = vpop.f32.mrb[0].mxu0
    %388 = vmatprep.mubr.f32.mxu0 %v107
    %389 = vmatmul.mubr.f32.gmra.mrb[0].mxu0 %v106
    %v390 = vpop.f32.mrb[0].mxu0
    %v391 = vadd.f32 %v316, %v390
    %v392 = vpop.f32.mrb[0].mxu0
    %393 = vdwg.mxu0
    %394 = vmatprep.subr.mxu0 0.0
    %395 = vmatpush1.msra.mxu0 %v176
    %396 = vmatprep.subr.mxu0 0.0
    %397 = vmatpush1.msra.mxu0 %v177
    %398 = vmatprep.subr.mxu0 0.0
    %399 = vmatpush1.msra.mxu0 %v178
    %400 = vmatprep.subr.mxu0 0.0
    %401 = vmatpush1.msra.mxu0 %v179
    %402 = vmatprep.subr.mxu0 0.0
    %403 = vmatpush1.msra.mxu0 %v180
    %404 = vmatprep.subr.mxu0 0.0
    %405 = vmatpush1.msra.mxu0 %v181
    %406 = vmatprep.subr.mxu0 0.0
    %407 = vmatpush1.msra.mxu0 %v182
    %408 = vmatprep.subr.mxu0 0.0
    %409 = vmatpush1.msra.mxu0 %v183
    %410 = vmatprep.subr.mxu0 0.0
    %411 = vmatpush1.msra.mxu0 %v184
    %412 = vmatprep.subr.mxu0 0.0
    %413 = vmatpush1.msra.mxu0 %v185
    %414 = vmatprep.subr.mxu0 0.0
    %415 = vmatpush1.msra.mxu0 %v186
    %416 = vmatprep.subr.mxu0 0.0
    %417 = vmatpush1.msra.mxu0 %v187
    %418 = vmatprep.subr.mxu0 0.0
    %419 = vmatpush1.msra.mxu0 %v188
    %420 = vmatprep.subr.mxu0 0.0
    %421 = vmatpush1.msra.mxu0 %v189
    %422 = vmatprep.subr.mxu0 0.0
    %423 = vmatpush1.msra.mxu0 %v190
    %424 = vmatprep.subr.mxu0 0.0
    %425 = vmatpush1.msra.mxu0 %v191
    %426 = vmatprep.subr.mxu0 0.0
    %427 = vmatpush1.msra.mxu0 %v192
    %428 = vmatprep.subr.mxu0 0.0
    %429 = vmatpush1.msra.mxu0 %v193
    %430 = vmatprep.subr.mxu0 0.0
    %431 = vmatpush1.msra.mxu0 %v194
    %432 = vmatprep.subr.mxu0 0.0
    %433 = vmatpush1.msra.mxu0 %v195
    %434 = vmatprep.subr.mxu0 0.0
    %435 = vmatpush1.msra.mxu0 %v196
    %436 = vmatprep.subr.mxu0 0.0
    %437 = vmatpush1.msra.mxu0 %v197
    %438 = vmatprep.subr.mxu0 0.0
    %439 = vmatpush1.msra.mxu0 %v198
    %440 = vmatprep.subr.mxu0 0.0
    %441 = vmatpush1.msra.mxu0 %v199
    %442 = vmatprep.subr.mxu0 0.0
    %443 = vmatpush1.msra.mxu0 %v200
    %444 = vmatprep.subr.mxu0 0.0
    %445 = vmatpush1.msra.mxu0 %v201
    %446 = vmatprep.subr.mxu0 0.0
    %447 = vmatpush1.msra.mxu0 %v202
    %448 = vmatprep.subr.mxu0 0.0
    %449 = vmatpush1.msra.mxu0 %v203
    %450 = vmatprep.subr.mxu0 0.0
    %451 = vmatpush1.msra.mxu0 %v204
    %452 = vmatprep.subr.mxu0 0.0
    %453 = vmatpush1.msra.mxu0 %v205
    %454 = vmatprep.subr.mxu0 0.0
    %455 = vmatpush1.msra.mxu0 %v206
    %456 = vmatprep.subr.mxu0 0.0
    %457 = vmatpush1.msra.mxu0 %v207
    %458 = vmatprep.mubr.f32.mxu0 %v101
    %459 = vmatmul.mubr.f32.gmra.mrb[0].mxu0 %v100
    %v460 = vpop.f32.mrb[0].mxu0
    %v461 = vadd.f32 %v386, %v460
    %v462 = vpop.f32.mrb[0].mxu0
    %463 = vmatprep.mubr.f32.mxu0 %v109
    %464 = vmatmul.mubr.f32.gmra.mrb[0].mxu0 %v108
    %v465 = vpop.f32.mrb[0].mxu0
    %v466 = vadd.f32 %v391, %v465
    %v467 = vpop.f32.mrb[0].mxu0
    %468 = vdwg.mxu0
    %469 = vmatprep.subr.mxu0 0.0
    %470 = vmatpush1.msra.mxu0 %v208
    %471 = vmatprep.subr.mxu0 0.0
    %472 = vmatpush1.msra.mxu0 %v209
    %473 = vmatprep.subr.mxu0 0.0
    %474 = vmatpush1.msra.mxu0 %v210
    %475 = vmatprep.subr.mxu0 0.0
    %476 = vmatpush1.msra.mxu0 %v211
    %477 = vmatprep.subr.mxu0 0.0
    %478 = vmatpush1.msra.mxu0 %v212
    %479 = vmatprep.subr.mxu0 0.0
    %480 = vmatpush1.msra.mxu0 %v213
    %481 = vmatprep.subr.mxu0 0.0
    %482 = vmatpush1.msra.mxu0 %v214
    %483 = vmatprep.subr.mxu0 0.0
    %484 = vmatpush1.msra.mxu0 %v215
    %485 = vmatprep.subr.mxu0 0.0
    %486 = vmatpush1.msra.mxu0 %v216
    %487 = vmatprep.subr.mxu0 0.0
    %488 = vmatpush1.msra.mxu0 %v217
    %489 = vmatprep.subr.mxu0 0.0
    %490 = vmatpush1.msra.mxu0 %v218
    %491 = vmatprep.subr.mxu0 0.0
    %492 = vmatpush1.msra.mxu0 %v219
    %493 = vmatprep.subr.mxu0 0.0
    %494 = vmatpush1.msra.mxu0 %v220
    %495 = vmatprep.subr.mxu0 0.0
    %496 = vmatpush1.msra.mxu0 %v221
    %497 = vmatprep.subr.mxu0 0.0
    %498 = vmatpush1.msra.mxu0 %v222
    %499 = vmatprep.subr.mxu0 0.0
    %500 = vmatpush1.msra.mxu0 %v223
    %501 = vmatprep.subr.mxu0 0.0
    %502 = vmatpush1.msra.mxu0 %v224
    %503 = vmatprep.subr.mxu0 0.0
    %504 = vmatpush1.msra.mxu0 %v225
    %505 = vmatprep.subr.mxu0 0.0
    %506 = vmatpush1.msra.mxu0 %v226
    %507 = vmatprep.subr.mxu0 0.0
    %508 = vmatpush1.msra.mxu0 %v227
    %509 = vmatprep.subr.mxu0 0.0
    %510 = vmatpush1.msra.mxu0 %v228
    %511 = vmatprep.subr.mxu0 0.0
    %512 = vmatpush1.msra.mxu0 %v229
    %513 = vmatprep.subr.mxu0 0.0
    %514 = vmatpush1.msra.mxu0 %v230
    %515 = vmatprep.subr.mxu0 0.0
    %516 = vmatpush1.msra.mxu0 %v231
    %517 = vmatprep.subr.mxu0 0.0
    %518 = vmatpush1.msra.mxu0 %v232
    %519 = vmatprep.subr.mxu0 0.0
    %520 = vmatpush1.msra.mxu0 %v233
    %521 = vmatprep.subr.mxu0 0.0
    %522 = vmatpush1.msra.mxu0 %v234
    %523 = vmatprep.subr.mxu0 0.0
    %524 = vmatpush1.msra.mxu0 %v235
    %525 = vmatprep.subr.mxu0 0.0
    %526 = vmatpush1.msra.mxu0 %v236
    %527 = vmatprep.subr.mxu0 0.0
    %528 = vmatpush1.msra.mxu0 0.0
    %529 = vmatprep.subr.mxu0 0.0
    %530 = vmatpush1.msra.mxu0 0.0
    %531 = vmatprep.subr.mxu0 0.0
    %532 = vmatpush1.msra.mxu0 0.0
    %533 = vmatprep.mubr.f32.mxu0 %v239
    %534 = vmatmul.mubr.f32.gmra.mrb[0].mxu0 %v102
    %v535 = vpop.f32.mrb[0].mxu0
    %v536 = vadd.f32 %v461, %v535
    %v537 = vpop.f32.mrb[0].mxu0
    %538 = vmatprep.mubr.f32.mxu0 %v242
    %539 = vmatmul.mubr.f32.gmra.mrb[0].mxu0 %v110
    %v540 = vpop.f32.mrb[0].mxu0
    %v541 = vadd.f32 %v466, %v540
    %v542 = vpop.f32.mrb[0].mxu0
    %543 = vdwg.mxu0
    %v544 = vld [vmem:[%s2] sm:$0xff]
    %v545 = vld [vmem:[%s2 + $0x8] sm:$0xff]
    %v546 = vld [vmem:[%s3] sm:$0x1]
    %v548 = vlaneseq
    %v549 = vshrl.u32 %v548, 7
    %v550 = vsub.s32 0, %v549
    %v551 = vrot.slane %v546, %v550
    %v553 = vadd.f32 %v536, %v551
    %vm554 = vcmask 130048
    %v556 = vsel %vm554, 0.0, 0
    %558 = vmatprep.subr.mxu0 0.0
    %559 = vmatpush1.msra.mxu0 %v544
    %560 = vmatprep.subr.mxu0 0.0
    %561 = vmatpush1.msra.mxu0 %v545
    %562 = vmatprep.subr.mxu0 0.0
    %563 = vmatpush1.msra.mxu0 0.0
    %564 = vmatprep.subr.mxu0 0.0
    %565 = vmatpush1.msra.mxu0 0.0
    %566 = vmatprep.subr.mxu0 0.0
    %567 = vmatpush1.msra.mxu0 0.0
    %568 = vmatprep.subr.mxu0 0.0
    %569 = vmatpush1.msra.mxu0 0.0
    %570 = vmatprep.subr.mxu0 0.0
    %571 = vmatpush1.msra.mxu0 0.0
    %572 = vmatprep.subr.mxu0 0.0
    %573 = vmatpush1.msra.mxu0 0.0
    %574 = vmatprep.subr.mxu0 0.0
    %575 = vmatpush1.msra.mxu0 0.0
    %576 = vmatprep.subr.mxu0 0.0
    %577 = vmatpush1.msra.mxu0 0.0
    %578 = vmatprep.subr.mxu0 0.0
    %579 = vmatpush1.msra.mxu0 0.0
    %580 = vmatprep.subr.mxu0 0.0
    %581 = vmatpush1.msra.mxu0 0.0
    %582 = vmatprep.subr.mxu0 0.0
    %583 = vmatpush1.msra.mxu0 0.0
    %584 = vmatprep.subr.mxu0 0.0
    %585 = vmatpush1.msra.mxu0 0.0
    %586 = vmatprep.subr.mxu0 0.0
    %587 = vmatpush1.msra.mxu0 0.0
    %588 = vmatprep.subr.mxu0 0.0
    %589 = vmatpush1.msra.mxu0 0.0
    %590 = vmatprep.subr.mxu0 0.0
    %591 = vmatpush1.msra.mxu0 0.0
    %592 = vmatprep.subr.mxu0 0.0
    %593 = vmatpush1.msra.mxu0 0.0
    %594 = vmatprep.subr.mxu0 0.0
    %595 = vmatpush1.msra.mxu0 0.0
    %596 = vmatprep.subr.mxu0 0.0
    %597 = vmatpush1.msra.mxu0 0.0
    %598 = vmatprep.subr.mxu0 0.0
    %599 = vmatpush1.msra.mxu0 0.0
    %600 = vmatprep.subr.mxu0 0.0
    %601 = vmatpush1.msra.mxu0 0.0
    %602 = vmatprep.subr.mxu0 0.0
    %603 = vmatpush1.msra.mxu0 0.0
    %604 = vmatprep.subr.mxu0 0.0
    %605 = vmatpush1.msra.mxu0 0.0
    %606 = vmatprep.subr.mxu0 0.0
    %607 = vmatpush1.msra.mxu0 0.0
    %608 = vmatprep.subr.mxu0 0.0
    %609 = vmatpush1.msra.mxu0 0.0
    %610 = vmatprep.subr.mxu0 0.0
    %611 = vmatpush1.msra.mxu0 0.0
    %612 = vmatprep.subr.mxu0 0.0
    %613 = vmatpush1.msra.mxu0 0.0
    %614 = vmatprep.subr.mxu0 0.0
    %615 = vmatpush1.msra.mxu0 0.0
    %616 = vmatprep.subr.mxu0 0.0
    %617 = vmatpush1.msra.mxu0 0.0
    %618 = vmatprep.subr.mxu0 0.0
    %619 = vmatpush1.msra.mxu0 0.0
    %620 = vmatprep.subr.mxu0 0.0
    %621 = vmatpush1.msra.mxu0 0.0
    %622 = vmatprep.mubr.f32.mxu0 0.0
    %623 = vmatmul.mubr.f32.gmra.mrb[0].mxu0 %v556
    %v624 = vpop.f32.mrb[0].mxu0
    %v625 = vadd.f32 0.0, %v624
    %v626 = vpop.f32.mrb[0].mxu0
    %627 = vdwg.mxu0
    %v628 = vadd.f32 %v553, %v625
    %v629 = vxor.u32 %v628, 2147483648
    %v630 = vmul.f32 %v629, 1.442695
    %v631 = vpow.pop %v630
    %v632 = vadd.f32 %v631, 1.0
    %v633 = vrcp.pop %v632
    %v634 = vmul.f32 1.0, %v633
    %v635 = vtanh.pop %v628
    %v636 = vmul.f32 %v634, 0.0
    %638 = vrot.lane.b32.xlu0 %v635, 96
    %v639 = vpop.permute.xlu0 %638
    %v641 = vmul.f32 %v634, %v639
    %643 = vrot.lane.b32.xlu0 %v641, 16
    %v644 = vpop.permute.xlu0 %643
    %v646 = vadd.f32 %v636, %v644
    %v647 = vtanh.pop %v646
    %649 = vrot.lane.b32.xlu0 %v647, 32
    %v650 = vpop.permute.xlu0 %649
    %v652 = vmul.f32 %v634, %v650
    %654 = vrot.lane.b32.xlu0 %v652, 80
    %v655 = vpop.permute.xlu0 %654
    %v656 = vsel %vm554, %v655, 0
    %658 = vmatprep.subr.mxu0 0.0
    %659 = vmatpush1.msra.mxu0 %v544
    %660 = vmatprep.subr.mxu0 0.0
    %661 = vmatpush1.msra.mxu0 %v545
    %662 = vmatprep.subr.mxu0 0.0
    %663 = vmatpush1.msra.mxu0 0.0
    %664 = vmatprep.subr.mxu0 0.0
    %665 = vmatpush1.msra.mxu0 0.0
    %666 = vmatprep.subr.mxu0 0.0
    %667 = vmatpush1.msra.mxu0 0.0
    %668 = vmatprep.subr.mxu0 0.0
    %669 = vmatpush1.msra.mxu0 0.0
    %670 = vmatprep.subr.mxu0 0.0
    %671 = vmatpush1.msra.mxu0 0.0
    %672 = vmatprep.subr.mxu0 0.0
    %673 = vmatpush1.msra.mxu0 0.0
    %674 = vmatprep.subr.mxu0 0.0
    %675 = vmatpush1.msra.mxu0 0.0
    %676 = vmatprep.subr.mxu0 0.0
    %677 = vmatpush1.msra.mxu0 0.0
    %678 = vmatprep.subr.mxu0 0.0
    %679 = vmatpush1.msra.mxu0 0.0
    %680 = vmatprep.subr.mxu0 0.0
    %681 = vmatpush1.msra.mxu0 0.0
    %682 = vmatprep.subr.mxu0 0.0
    %683 = vmatpush1.msra.mxu0 0.0
    %684 = vmatprep.subr.mxu0 0.0
    %685 = vmatpush1.msra.mxu0 0.0
    %686 = vmatprep.subr.mxu0 0.0
    %687 = vmatpush1.msra.mxu0 0.0
    %688 = vmatprep.subr.mxu0 0.0
    %689 = vmatpush1.msra.mxu0 0.0
    %690 = vmatprep.subr.mxu0 0.0
    %691 = vmatpush1.msra.mxu0 0.0
    %692 = vmatprep.subr.mxu0 0.0
    %693 = vmatpush1.msra.mxu0 0.0
    %694 = vmatprep.subr.mxu0 0.0
    %695 = vmatpush1.msra.mxu0 0.0
    %696 = vmatprep.subr.mxu0 0.0
    %697 = vmatpush1.msra.mxu0 0.0
    %698 = vmatprep.subr.mxu0 0.0
    %699 = vmatpush1.msra.mxu0 0.0
    %700 = vmatprep.subr.mxu0 0.0
    %701 = vmatpush1.msra.mxu0 0.0
    %702 = vmatprep.subr.mxu0 0.0
    %703 = vmatpush1.msra.mxu0 0.0
    %704 = vmatprep.subr.mxu0 0.0
    %705 = vmatpush1.msra.mxu0 0.0
    %706 = vmatprep.subr.mxu0 0.0
    %707 = vmatpush1.msra.mxu0 0.0
    %708 = vmatprep.subr.mxu0 0.0
    %709 = vmatpush1.msra.mxu0 0.0
    %710 = vmatprep.subr.mxu0 0.0
    %711 = vmatpush1.msra.mxu0 0.0
    %712 = vmatprep.subr.mxu0 0.0
    %713 = vmatpush1.msra.mxu0 0.0
    %714 = vmatprep.subr.mxu0 0.0
    %715 = vmatpush1.msra.mxu0 0.0
    %716 = vmatprep.subr.mxu0 0.0
    %717 = vmatpush1.msra.mxu0 0.0
    %718 = vmatprep.subr.mxu0 0.0
    %719 = vmatpush1.msra.mxu0 0.0
    %720 = vmatprep.subr.mxu0 0.0
    %721 = vmatpush1.msra.mxu0 0.0
    %722 = vmatprep.mubr.f32.mxu0 0.0
    %723 = vmatmul.mubr.f32.gmra.mrb[0].mxu0 %v656
    %v724 = vpop.f32.mrb[0].mxu0
    %v725 = vadd.f32 0.0, %v724
    %v726 = vpop.f32.mrb[0].mxu0
    %727 = vdwg.mxu0
    %v729 = vrot.slane %v725, 6
    %v731 = vadd.f32 %v553, %v729
    %v732 = vxor.u32 %v731, 2147483648
    %v733 = vmul.f32 %v732, 1.442695
    %v734 = vpow.pop %v733
    %v735 = vadd.f32 %v734, 1.0
    %v736 = vrcp.pop %v735
    %v737 = vmul.f32 1.0, %v736
    %v738 = vtanh.pop %v731
    %v740 = vrot.slane %v646, 6
    %v742 = vmul.f32 %v737, %v740
    %744 = vrot.lane.b32.xlu0 %v738, 96
    %v745 = vpop.permute.xlu0 %744
    %v747 = vmul.f32 %v737, %v745
    %749 = vrot.lane.b32.xlu0 %v747, 16
    %v750 = vpop.permute.xlu0 %749
    %v752 = vadd.f32 %v742, %v750
    %v753 = vtanh.pop %v752
    %755 = vrot.lane.b32.xlu0 %v753, 32
    %v756 = vpop.permute.xlu0 %755
    %v758 = vmul.f32 %v737, %v756
    %v760 = vrot.slane %v758, 2
    %761 = vrot.lane.b32.xlu0 %v760, 80
    %v762 = vpop.permute.xlu0 %761
    %v763 = vsel %vm554, %v762, 0
    %765 = vmatprep.subr.mxu0 0.0
    %766 = vmatpush1.msra.mxu0 %v544
    %767 = vmatprep.subr.mxu0 0.0
    %768 = vmatpush1.msra.mxu0 %v545
    %769 = vmatprep.subr.mxu0 0.0
    %770 = vmatpush1.msra.mxu0 0.0
    %771 = vmatprep.subr.mxu0 0.0
    %772 = vmatpush1.msra.mxu0 0.0
    %773 = vmatprep.subr.mxu0 0.0
    %774 = vmatpush1.msra.mxu0 0.0
    %775 = vmatprep.subr.mxu0 0.0
    %776 = vmatpush1.msra.mxu0 0.0
    %777 = vmatprep.subr.mxu0 0.0
    %778 = vmatpush1.msra.mxu0 0.0
    %779 = vmatprep.subr.mxu0 0.0
    %780 = vmatpush1.msra.mxu0 0.0
    %781 = vmatprep.subr.mxu0 0.0
    %782 = vmatpush1.msra.mxu0 0.0
    %783 = vmatprep.subr.mxu0 0.0
    %784 = vmatpush1.msra.mxu0 0.0
    %785 = vmatprep.subr.mxu0 0.0
    %786 = vmatpush1.msra.mxu0 0.0
    %787 = vmatprep.subr.mxu0 0.0
    %788 = vmatpush1.msra.mxu0 0.0
    %789 = vmatprep.subr.mxu0 0.0
    %790 = vmatpush1.msra.mxu0 0.0
    %791 = vmatprep.subr.mxu0 0.0
    %792 = vmatpush1.msra.mxu0 0.0
    %793 = vmatprep.subr.mxu0 0.0
    %794 = vmatpush1.msra.mxu0 0.0
    %795 = vmatprep.subr.mxu0 0.0
    %796 = vmatpush1.msra.mxu0 0.0
    %797 = vmatprep.subr.mxu0 0.0
    %798 = vmatpush1.msra.mxu0 0.0
    %799 = vmatprep.subr.mxu0 0.0
    %800 = vmatpush1.msra.mxu0 0.0
    %801 = vmatprep.subr.mxu0 0.0
    %802 = vmatpush1.msra.mxu0 0.0
    %803 = vmatprep.subr.mxu0 0.0
    %804 = vmatpush1.msra.mxu0 0.0
    %805 = vmatprep.subr.mxu0 0.0
    %806 = vmatpush1.msra.mxu0 0.0
    %807 = vmatprep.subr.mxu0 0.0
    %808 = vmatpush1.msra.mxu0 0.0
    %809 = vmatprep.subr.mxu0 0.0
    %810 = vmatpush1.msra.mxu0 0.0
    %811 = vmatprep.subr.mxu0 0.0
    %812 = vmatpush1.msra.mxu0 0.0
    %813 = vmatprep.subr.mxu0 0.0
    %814 = vmatpush1.msra.mxu0 0.0
    %815 = vmatprep.subr.mxu0 0.0
    %816 = vmatpush1.msra.mxu0 0.0
    %817 = vmatprep.subr.mxu0 0.0
    %818 = vmatpush1.msra.mxu0 0.0
    %819 = vmatprep.subr.mxu0 0.0
    %820 = vmatpush1.msra.mxu0 0.0
    %821 = vmatprep.subr.mxu0 0.0
    %822 = vmatpush1.msra.mxu0 0.0
    %823 = vmatprep.subr.mxu0 0.0
    %824 = vmatpush1.msra.mxu0 0.0
    %825 = vmatprep.subr.mxu0 0.0
    %826 = vmatpush1.msra.mxu0 0.0
    %827 = vmatprep.subr.mxu0 0.0
    %828 = vmatpush1.msra.mxu0 0.0
    %829 = vmatprep.mubr.f32.mxu0 0.0
    %830 = vmatmul.mubr.f32.gmra.mrb[0].mxu0 %v763
    %v831 = vpop.f32.mrb[0].mxu0
    %v832 = vadd.f32 0.0, %v831
    %v833 = vpop.f32.mrb[0].mxu0
    %834 = vdwg.mxu0
    %v836 = vrot.slane %v832, 4
    %v838 = vadd.f32 %v553, %v836
    %v839 = vxor.u32 %v838, 2147483648
    %v840 = vmul.f32 %v839, 1.442695
    %v841 = vpow.pop %v840
    %v842 = vadd.f32 %v841, 1.0
    %v843 = vrcp.pop %v842
    %v844 = vmul.f32 1.0, %v843
    %v845 = vtanh.pop %v838
    %v847 = vrot.slane %v752, 6
    %v849 = vmul.f32 %v844, %v847
    %851 = vrot.lane.b32.xlu0 %v845, 96
    %v852 = vpop.permute.xlu0 %851
    %v854 = vmul.f32 %v844, %v852
    %856 = vrot.lane.b32.xlu0 %v854, 16
    %v857 = vpop.permute.xlu0 %856
    %v859 = vadd.f32 %v849, %v857
    %v860 = vtanh.pop %v859
    %862 = vrot.lane.b32.xlu0 %v860, 32
    %v863 = vpop.permute.xlu0 %862
    %v865 = vmul.f32 %v844, %v863
    %v867 = vrot.slane %v865, 4
    %868 = vrot.lane.b32.xlu0 %v867, 80
    %v869 = vpop.permute.xlu0 %868
    %v870 = vsel %vm554, %v869, 0
    %872 = vmatprep.subr.mxu0 0.0
    %873 = vmatpush1.msra.mxu0 %v544
    %874 = vmatprep.subr.mxu0 0.0
    %875 = vmatpush1.msra.mxu0 %v545
    %876 = vmatprep.subr.mxu0 0.0
    %877 = vmatpush1.msra.mxu0 0.0
    %878 = vmatprep.subr.mxu0 0.0
    %879 = vmatpush1.msra.mxu0 0.0
    %880 = vmatprep.subr.mxu0 0.0
    %881 = vmatpush1.msra.mxu0 0.0
    %882 = vmatprep.subr.mxu0 0.0
    %883 = vmatpush1.msra.mxu0 0.0
    %884 = vmatprep.subr.mxu0 0.0
    %885 = vmatpush1.msra.mxu0 0.0
    %886 = vmatprep.subr.mxu0 0.0
    %887 = vmatpush1.msra.mxu0 0.0
    %888 = vmatprep.subr.mxu0 0.0
    %889 = vmatpush1.msra.mxu0 0.0
    %890 = vmatprep.subr.mxu0 0.0
    %891 = vmatpush1.msra.mxu0 0.0
    %892 = vmatprep.subr.mxu0 0.0
    %893 = vmatpush1.msra.mxu0 0.0
    %894 = vmatprep.subr.mxu0 0.0
    %895 = vmatpush1.msra.mxu0 0.0
    %896 = vmatprep.subr.mxu0 0.0
    %897 = vmatpush1.msra.mxu0 0.0
    %898 = vmatprep.subr.mxu0 0.0
    %899 = vmatpush1.msra.mxu0 0.0
    %900 = vmatprep.subr.mxu0 0.0
    %901 = vmatpush1.msra.mxu0 0.0
    %902 = vmatprep.subr.mxu0 0.0
    %903 = vmatpush1.msra.mxu0 0.0
    %904 = vmatprep.subr.mxu0 0.0
    %905 = vmatpush1.msra.mxu0 0.0
    %906 = vmatprep.subr.mxu0 0.0
    %907 = vmatpush1.msra.mxu0 0.0
    %908 = vmatprep.subr.mxu0 0.0
    %909 = vmatpush1.msra.mxu0 0.0
    %910 = vmatprep.subr.mxu0 0.0
    %911 = vmatpush1.msra.mxu0 0.0
    %912 = vmatprep.subr.mxu0 0.0
    %913 = vmatpush1.msra.mxu0 0.0
    %914 = vmatprep.subr.mxu0 0.0
    %915 = vmatpush1.msra.mxu0 0.0
    %916 = vmatprep.subr.mxu0 0.0
    %917 = vmatpush1.msra.mxu0 0.0
    %918 = vmatprep.subr.mxu0 0.0
    %919 = vmatpush1.msra.mxu0 0.0
    %920 = vmatprep.subr.mxu0 0.0
    %921 = vmatpush1.msra.mxu0 0.0
    %922 = vmatprep.subr.mxu0 0.0
    %923 = vmatpush1.msra.mxu0 0.0
    %924 = vmatprep.subr.mxu0 0.0
    %925 = vmatpush1.msra.mxu0 0.0
    %926 = vmatprep.subr.mxu0 0.0
    %927 = vmatpush1.msra.mxu0 0.0
    %928 = vmatprep.subr.mxu0 0.0
    %929 = vmatpush1.msra.mxu0 0.0
    %930 = vmatprep.subr.mxu0 0.0
    %931 = vmatpush1.msra.mxu0 0.0
    %932 = vmatprep.subr.mxu0 0.0
    %933 = vmatpush1.msra.mxu0 0.0
    %934 = vmatprep.subr.mxu0 0.0
    %935 = vmatpush1.msra.mxu0 0.0
    %936 = vmatprep.mubr.f32.mxu0 0.0
    %937 = vmatmul.mubr.f32.gmra.mrb[0].mxu0 %v870
    %v938 = vpop.f32.mrb[0].mxu0
    %v939 = vadd.f32 0.0, %v938
    %v940 = vpop.f32.mrb[0].mxu0
    %941 = vdwg.mxu0
    %v943 = vrot.slane %v939, 2
    %v945 = vadd.f32 %v553, %v943
    %v946 = vxor.u32 %v945, 2147483648
    %v947 = vmul.f32 %v946, 1.442695
    %v948 = vpow.pop %v947
    %v949 = vadd.f32 %v948, 1.0
    %v950 = vrcp.pop %v949
    %v951 = vmul.f32 1.0, %v950
    %v952 = vtanh.pop %v945
    %v954 = vrot.slane %v859, 6
    %v956 = vmul.f32 %v951, %v954
    %958 = vrot.lane.b32.xlu0 %v952, 96
    %v959 = vpop.permute.xlu0 %958
    %v961 = vmul.f32 %v951, %v959
    %963 = vrot.lane.b32.xlu0 %v961, 16
    %v964 = vpop.permute.xlu0 %963
    %v966 = vadd.f32 %v956, %v964
    %v967 = vtanh.pop %v966
    %969 = vrot.lane.b32.xlu0 %v967, 32
    %v970 = vpop.permute.xlu0 %969
    %v972 = vmul.f32 %v951, %v970
    %v973 = vadd.f32 %v541, %v551
    %v975 = vrot.slane %v972, 6
    %976 = vrot.lane.b32.xlu0 %v975, 80
    %v977 = vpop.permute.xlu0 %976
    %v978 = vsel %vm554, %v977, 0
    %980 = vmatprep.subr.mxu0 0.0
    %981 = vmatpush1.msra.mxu0 %v544
    %982 = vmatprep.subr.mxu0 0.0
    %983 = vmatpush1.msra.mxu0 %v545
    %984 = vmatprep.subr.mxu0 0.0
    %985 = vmatpush1.msra.mxu0 0.0
    %986 = vmatprep.subr.mxu0 0.0
    %987 = vmatpush1.msra.mxu0 0.0
    %988 = vmatprep.subr.mxu0 0.0
    %989 = vmatpush1.msra.mxu0 0.0
    %990 = vmatprep.subr.mxu0 0.0
    %991 = vmatpush1.msra.mxu0 0.0
    %992 = vmatprep.subr.mxu0 0.0
    %993 = vmatpush1.msra.mxu0 0.0
    %994 = vmatprep.subr.mxu0 0.0
    %995 = vmatpush1.msra.mxu0 0.0
    %996 = vmatprep.subr.mxu0 0.0
    %997 = vmatpush1.msra.mxu0 0.0
    %998 = vmatprep.subr.mxu0 0.0
    %999 = vmatpush1.msra.mxu0 0.0
    %1000 = vmatprep.subr.mxu0 0.0
    %1001 = vmatpush1.msra.mxu0 0.0
    %1002 = vmatprep.subr.mxu0 0.0
    %1003 = vmatpush1.msra.mxu0 0.0
    %1004 = vmatprep.subr.mxu0 0.0
    %1005 = vmatpush1.msra.mxu0 0.0
    %1006 = vmatprep.subr.mxu0 0.0
    %1007 = vmatpush1.msra.mxu0 0.0
    %1008 = vmatprep.subr.mxu0 0.0
    %1009 = vmatpush1.msra.mxu0 0.0
    %1010 = vmatprep.subr.mxu0 0.0
    %1011 = vmatpush1.msra.mxu0 0.0
    %1012 = vmatprep.subr.mxu0 0.0
    %1013 = vmatpush1.msra.mxu0 0.0
    %1014 = vmatprep.subr.mxu0 0.0
    %1015 = vmatpush1.msra.mxu0 0.0
    %1016 = vmatprep.subr.mxu0 0.0
    %1017 = vmatpush1.msra.mxu0 0.0
    %1018 = vmatprep.subr.mxu0 0.0
    %1019 = vmatpush1.msra.mxu0 0.0
    %1020 = vmatprep.subr.mxu0 0.0
    %1021 = vmatpush1.msra.mxu0 0.0
    %1022 = vmatprep.subr.mxu0 0.0
    %1023 = vmatpush1.msra.mxu0 0.0
    %1024 = vmatprep.subr.mxu0 0.0
    %1025 = vmatpush1.msra.mxu0 0.0
    %1026 = vmatprep.subr.mxu0 0.0
    %1027 = vmatpush1.msra.mxu0 0.0
    %1028 = vmatprep.subr.mxu0 0.0
    %1029 = vmatpush1.msra.mxu0 0.0
    %1030 = vmatprep.subr.mxu0 0.0
    %1031 = vmatpush1.msra.mxu0 0.0
    %1032 = vmatprep.subr.mxu0 0.0
    %1033 = vmatpush1.msra.mxu0 0.0
    %1034 = vmatprep.subr.mxu0 0.0
    %1035 = vmatpush1.msra.mxu0 0.0
    %1036 = vmatprep.subr.mxu0 0.0
    %1037 = vmatpush1.msra.mxu0 0.0
    %1038 = vmatprep.subr.mxu0 0.0
    %1039 = vmatpush1.msra.mxu0 0.0
    %1040 = vmatprep.subr.mxu0 0.0
    %1041 = vmatpush1.msra.mxu0 0.0
    %1042 = vmatprep.subr.mxu0 0.0
    %1043 = vmatpush1.msra.mxu0 0.0
    %1044 = vmatprep.mubr.f32.mxu0 0.0
    %1045 = vmatmul.mubr.f32.gmra.mrb[0].mxu0 %v978
    %v1046 = vpop.f32.mrb[0].mxu0
    %v1047 = vadd.f32 0.0, %v1046
    %v1048 = vpop.f32.mrb[0].mxu0
    %1049 = vdwg.mxu0
    %v1050 = vadd.f32 %v973, %v1047
    %v1051 = vxor.u32 %v1050, 2147483648
    %v1052 = vmul.f32 %v1051, 1.442695
    %v1053 = vpow.pop %v1052
    %v1054 = vadd.f32 %v1053, 1.0
    %v1055 = vrcp.pop %v1054
    %v1056 = vmul.f32 1.0, %v1055
    %v1057 = vtanh.pop %v1050
    %v1059 = vrot.slane %v966, 6
    %v1061 = vmul.f32 %v1056, %v1059
    %1063 = vrot.lane.b32.xlu0 %v1057, 96
    %v1064 = vpop.permute.xlu0 %1063
    %v1066 = vmul.f32 %v1056, %v1064
    %1068 = vrot.lane.b32.xlu0 %v1066, 16
    %v1069 = vpop.permute.xlu0 %1068
    %v1071 = vadd.f32 %v1061, %v1069
    %v1072 = vtanh.pop %v1071
    %1074 = vrot.lane.b32.xlu0 %v1072, 32
    %v1075 = vpop.permute.xlu0 %1074
    %v1077 = vmul.f32 %v1056, %v1075
    %1079 = vrot.lane.b32.xlu0 %v1077, 80
    %v1080 = vpop.permute.xlu0 %1079
    %v1081 = vsel %vm554, %v1080, 0
    %1083 = vmatprep.subr.mxu0 0.0
    %1084 = vmatpush1.msra.mxu0 %v544
    %1085 = vmatprep.subr.mxu0 0.0
    %1086 = vmatpush1.msra.mxu0 %v545
    %1087 = vmatprep.subr.mxu0 0.0
    %1088 = vmatpush1.msra.mxu0 0.0
    %1089 = vmatprep.subr.mxu0 0.0
    %1090 = vmatpush1.msra.mxu0 0.0
    %1091 = vmatprep.subr.mxu0 0.0
    %1092 = vmatpush1.msra.mxu0 0.0
    %1093 = vmatprep.subr.mxu0 0.0
    %1094 = vmatpush1.msra.mxu0 0.0
    %1095 = vmatprep.subr.mxu0 0.0
    %1096 = vmatpush1.msra.mxu0 0.0
    %1097 = vmatprep.subr.mxu0 0.0
    %1098 = vmatpush1.msra.mxu0 0.0
    %1099 = vmatprep.subr.mxu0 0.0
    %1100 = vmatpush1.msra.mxu0 0.0
    %1101 = vmatprep.subr.mxu0 0.0
    %1102 = vmatpush1.msra.mxu0 0.0
    %1103 = vmatprep.subr.mxu0 0.0
    %1104 = vmatpush1.msra.mxu0 0.0
    %1105 = vmatprep.subr.mxu0 0.0
    %1106 = vmatpush1.msra.mxu0 0.0
    %1107 = vmatprep.subr.mxu0 0.0
    %1108 = vmatpush1.msra.mxu0 0.0
    %1109 = vmatprep.subr.mxu0 0.0
    %1110 = vmatpush1.msra.mxu0 0.0
    %1111 = vmatprep.subr.mxu0 0.0
    %1112 = vmatpush1.msra.mxu0 0.0
    %1113 = vmatprep.subr.mxu0 0.0
    %1114 = vmatpush1.msra.mxu0 0.0
    %1115 = vmatprep.subr.mxu0 0.0
    %1116 = vmatpush1.msra.mxu0 0.0
    %1117 = vmatprep.subr.mxu0 0.0
    %1118 = vmatpush1.msra.mxu0 0.0
    %1119 = vmatprep.subr.mxu0 0.0
    %1120 = vmatpush1.msra.mxu0 0.0
    %1121 = vmatprep.subr.mxu0 0.0
    %1122 = vmatpush1.msra.mxu0 0.0
    %1123 = vmatprep.subr.mxu0 0.0
    %1124 = vmatpush1.msra.mxu0 0.0
    %1125 = vmatprep.subr.mxu0 0.0
    %1126 = vmatpush1.msra.mxu0 0.0
    %1127 = vmatprep.subr.mxu0 0.0
    %1128 = vmatpush1.msra.mxu0 0.0
    %1129 = vmatprep.subr.mxu0 0.0
    %1130 = vmatpush1.msra.mxu0 0.0
    %1131 = vmatprep.subr.mxu0 0.0
    %1132 = vmatpush1.msra.mxu0 0.0
    %1133 = vmatprep.subr.mxu0 0.0
    %1134 = vmatpush1.msra.mxu0 0.0
    %1135 = vmatprep.subr.mxu0 0.0
    %1136 = vmatpush1.msra.mxu0 0.0
    %1137 = vmatprep.subr.mxu0 0.0
    %1138 = vmatpush1.msra.mxu0 0.0
    %1139 = vmatprep.subr.mxu0 0.0
    %1140 = vmatpush1.msra.mxu0 0.0
    %1141 = vmatprep.subr.mxu0 0.0
    %1142 = vmatpush1.msra.mxu0 0.0
    %1143 = vmatprep.subr.mxu0 0.0
    %1144 = vmatpush1.msra.mxu0 0.0
    %1145 = vmatprep.subr.mxu0 0.0
    %1146 = vmatpush1.msra.mxu0 0.0
    %1147 = vmatprep.mubr.f32.mxu0 0.0
    %1148 = vmatmul.mubr.f32.gmra.mrb[0].mxu0 %v1081
    %v1149 = vpop.f32.mrb[0].mxu0
    %v1150 = vadd.f32 0.0, %v1149
    %v1151 = vpop.f32.mrb[0].mxu0
    %1152 = vdwg.mxu0
    %v1154 = vrot.slane %v1150, 6
    %v1156 = vadd.f32 %v973, %v1154
    %v1157 = vxor.u32 %v1156, 2147483648
    %v1158 = vmul.f32 %v1157, 1.442695
    %v1159 = vpow.pop %v1158
    %v1160 = vadd.f32 %v1159, 1.0
    %v1161 = vrcp.pop %v1160
    %v1162 = vmul.f32 1.0, %v1161
    %v1163 = vtanh.pop %v1156
    %v1165 = vrot.slane %v1071, 6
    %v1167 = vmul.f32 %v1162, %v1165
    %1169 = vrot.lane.b32.xlu0 %v1163, 96
    %v1170 = vpop.permute.xlu0 %1169
    %v1172 = vmul.f32 %v1162, %v1170
    %1174 = vrot.lane.b32.xlu0 %v1172, 16
    %v1175 = vpop.permute.xlu0 %1174
    %v1177 = vadd.f32 %v1167, %v1175
    %v1178 = vtanh.pop %v1177
    %1180 = vrot.lane.b32.xlu0 %v1178, 32
    %v1181 = vpop.permute.xlu0 %1180
    %v1183 = vmul.f32 %v1162, %v1181
    %v1185 = vrot.slane %v1183, 2
    %1186 = vrot.lane.b32.xlu0 %v1185, 80
    %v1187 = vpop.permute.xlu0 %1186
    %v1188 = vsel %vm554, %v1187, 0
    %1190 = vmatprep.subr.mxu0 0.0
    %1191 = vmatpush1.msra.mxu0 %v544
    %1192 = vmatprep.subr.mxu0 0.0
    %1193 = vmatpush1.msra.mxu0 %v545
    %1194 = vmatprep.subr.mxu0 0.0
    %1195 = vmatpush1.msra.mxu0 0.0
    %1196 = vmatprep.subr.mxu0 0.0
    %1197 = vmatpush1.msra.mxu0 0.0
    %1198 = vmatprep.subr.mxu0 0.0
    %1199 = vmatpush1.msra.mxu0 0.0
    %1200 = vmatprep.subr.mxu0 0.0
    %1201 = vmatpush1.msra.mxu0 0.0
    %1202 = vmatprep.subr.mxu0 0.0
    %1203 = vmatpush1.msra.mxu0 0.0
    %1204 = vmatprep.subr.mxu0 0.0
    %1205 = vmatpush1.msra.mxu0 0.0
    %1206 = vmatprep.subr.mxu0 0.0
    %1207 = vmatpush1.msra.mxu0 0.0
    %1208 = vmatprep.subr.mxu0 0.0
    %1209 = vmatpush1.msra.mxu0 0.0
    %1210 = vmatprep.subr.mxu0 0.0
    %1211 = vmatpush1.msra.mxu0 0.0
    %1212 = vmatprep.subr.mxu0 0.0
    %1213 = vmatpush1.msra.mxu0 0.0
    %1214 = vmatprep.subr.mxu0 0.0
    %1215 = vmatpush1.msra.mxu0 0.0
    %1216 = vmatprep.subr.mxu0 0.0
    %1217 = vmatpush1.msra.mxu0 0.0
    %1218 = vmatprep.subr.mxu0 0.0
    %1219 = vmatpush1.msra.mxu0 0.0
    %1220 = vmatprep.subr.mxu0 0.0
    %1221 = vmatpush1.msra.mxu0 0.0
    %1222 = vmatprep.subr.mxu0 0.0
    %1223 = vmatpush1.msra.mxu0 0.0
    %1224 = vmatprep.subr.mxu0 0.0
    %1225 = vmatpush1.msra.mxu0 0.0
    %1226 = vmatprep.subr.mxu0 0.0
    %1227 = vmatpush1.msra.mxu0 0.0
    %1228 = vmatprep.subr.mxu0 0.0
    %1229 = vmatpush1.msra.mxu0 0.0
    %1230 = vmatprep.subr.mxu0 0.0
    %1231 = vmatpush1.msra.mxu0 0.0
    %1232 = vmatprep.subr.mxu0 0.0
    %1233 = vmatpush1.msra.mxu0 0.0
    %1234 = vmatprep.subr.mxu0 0.0
    %1235 = vmatpush1.msra.mxu0 0.0
    %1236 = vmatprep.subr.mxu0 0.0
    %1237 = vmatpush1.msra.mxu0 0.0
    %1238 = vmatprep.subr.mxu0 0.0
    %1239 = vmatpush1.msra.mxu0 0.0
    %1240 = vmatprep.subr.mxu0 0.0
    %1241 = vmatpush1.msra.mxu0 0.0
    %1242 = vmatprep.subr.mxu0 0.0
    %1243 = vmatpush1.msra.mxu0 0.0
    %1244 = vmatprep.subr.mxu0 0.0
    %1245 = vmatpush1.msra.mxu0 0.0
    %1246 = vmatprep.subr.mxu0 0.0
    %1247 = vmatpush1.msra.mxu0 0.0
    %1248 = vmatprep.subr.mxu0 0.0
    %1249 = vmatpush1.msra.mxu0 0.0
    %1250 = vmatprep.subr.mxu0 0.0
    %1251 = vmatpush1.msra.mxu0 0.0
    %1252 = vmatprep.subr.mxu0 0.0
    %1253 = vmatpush1.msra.mxu0 0.0
    %1254 = vmatprep.mubr.f32.mxu0 0.0
    %1255 = vmatmul.mubr.f32.gmra.mrb[0].mxu0 %v1188
    %v1256 = vpop.f32.mrb[0].mxu0
    %v1257 = vadd.f32 0.0, %v1256
    %v1258 = vpop.f32.mrb[0].mxu0
    %1259 = vdwg.mxu0
    %v1261 = vrot.slane %v1257, 4
    %v1263 = vadd.f32 %v973, %v1261
    %v1264 = vxor.u32 %v1263, 2147483648
    %v1265 = vmul.f32 %v1264, 1.442695
    %v1266 = vpow.pop %v1265
    %v1267 = vadd.f32 %v1266, 1.0
    %v1268 = vrcp.pop %v1267
    %v1269 = vmul.f32 1.0, %v1268
    %v1270 = vtanh.pop %v1263
    %v1272 = vrot.slane %v1177, 6
    %v1274 = vmul.f32 %v1269, %v1272
    %1276 = vrot.lane.b32.xlu0 %v1270, 96
    %v1277 = vpop.permute.xlu0 %1276
    %v1279 = vmul.f32 %v1269, %v1277
    %1281 = vrot.lane.b32.xlu0 %v1279, 16
    %v1282 = vpop.permute.xlu0 %1281
    %v1284 = vadd.f32 %v1274, %v1282
    %v1285 = vtanh.pop %v1284
    %1287 = vrot.lane.b32.xlu0 %v1285, 32
    %v1288 = vpop.permute.xlu0 %1287
    %v1290 = vmul.f32 %v1269, %v1288
    %v1292 = vrot.slane %v1290, 4
    %1293 = vrot.lane.b32.xlu0 %v1292, 80
    %v1294 = vpop.permute.xlu0 %1293
    %v1295 = vsel %vm554, %v1294, 0
    %1297 = vmatprep.subr.mxu0 0.0
    %1298 = vmatpush1.msra.mxu0 %v544
    %1299 = vmatprep.subr.mxu0 0.0
    %1300 = vmatpush1.msra.mxu0 %v545
    %1301 = vmatprep.subr.mxu0 0.0
    %1302 = vmatpush1.msra.mxu0 0.0
    %1303 = vmatprep.subr.mxu0 0.0
    %1304 = vmatpush1.msra.mxu0 0.0
    %1305 = vmatprep.subr.mxu0 0.0
    %1306 = vmatpush1.msra.mxu0 0.0
    %1307 = vmatprep.subr.mxu0 0.0
    %1308 = vmatpush1.msra.mxu0 0.0
    %1309 = vmatprep.subr.mxu0 0.0
    %1310 = vmatpush1.msra.mxu0 0.0
    %1311 = vmatprep.subr.mxu0 0.0
    %1312 = vmatpush1.msra.mxu0 0.0
    %1313 = vmatprep.subr.mxu0 0.0
    %1314 = vmatpush1.msra.mxu0 0.0
    %1315 = vmatprep.subr.mxu0 0.0
    %1316 = vmatpush1.msra.mxu0 0.0
    %1317 = vmatprep.subr.mxu0 0.0
    %1318 = vmatpush1.msra.mxu0 0.0
    %1319 = vmatprep.subr.mxu0 0.0
    %1320 = vmatpush1.msra.mxu0 0.0
    %1321 = vmatprep.subr.mxu0 0.0
    %1322 = vmatpush1.msra.mxu0 0.0
    %1323 = vmatprep.subr.mxu0 0.0
    %1324 = vmatpush1.msra.mxu0 0.0
    %1325 = vmatprep.subr.mxu0 0.0
    %1326 = vmatpush1.msra.mxu0 0.0
    %1327 = vmatprep.subr.mxu0 0.0
    %1328 = vmatpush1.msra.mxu0 0.0
    %1329 = vmatprep.subr.mxu0 0.0
    %1330 = vmatpush1.msra.mxu0 0.0
    %1331 = vmatprep.subr.mxu0 0.0
    %1332 = vmatpush1.msra.mxu0 0.0
    %1333 = vmatprep.subr.mxu0 0.0
    %1334 = vmatpush1.msra.mxu0 0.0
    %1335 = vmatprep.subr.mxu0 0.0
    %1336 = vmatpush1.msra.mxu0 0.0
    %1337 = vmatprep.subr.mxu0 0.0
    %1338 = vmatpush1.msra.mxu0 0.0
    %1339 = vmatprep.subr.mxu0 0.0
    %1340 = vmatpush1.msra.mxu0 0.0
    %1341 = vmatprep.subr.mxu0 0.0
    %1342 = vmatpush1.msra.mxu0 0.0
    %1343 = vmatprep.subr.mxu0 0.0
    %1344 = vmatpush1.msra.mxu0 0.0
    %1345 = vmatprep.subr.mxu0 0.0
    %1346 = vmatpush1.msra.mxu0 0.0
    %1347 = vmatprep.subr.mxu0 0.0
    %1348 = vmatpush1.msra.mxu0 0.0
    %1349 = vmatprep.subr.mxu0 0.0
    %1350 = vmatpush1.msra.mxu0 0.0
    %1351 = vmatprep.subr.mxu0 0.0
    %1352 = vmatpush1.msra.mxu0 0.0
    %1353 = vmatprep.subr.mxu0 0.0
    %1354 = vmatpush1.msra.mxu0 0.0
    %1355 = vmatprep.subr.mxu0 0.0
    %1356 = vmatpush1.msra.mxu0 0.0
    %1357 = vmatprep.subr.mxu0 0.0
    %1358 = vmatpush1.msra.mxu0 0.0
    %1359 = vmatprep.subr.mxu0 0.0
    %1360 = vmatpush1.msra.mxu0 0.0
    %1361 = vmatprep.mubr.f32.mxu0 0.0
    %1362 = vmatmul.mubr.f32.gmra.mrb[0].mxu0 %v1295
    %v1363 = vpop.f32.mrb[0].mxu0
    %v1364 = vadd.f32 0.0, %v1363
    %v1365 = vpop.f32.mrb[0].mxu0
    %1366 = vdwg.mxu0
    %v1368 = vrot.slane %v1364, 2
    %v1370 = vadd.f32 %v973, %v1368
    %v1371 = vxor.u32 %v1370, 2147483648
    %v1372 = vmul.f32 %v1371, 1.442695
    %v1373 = vpow.pop %v1372
    %v1374 = vadd.f32 %v1373, 1.0
    %v1375 = vrcp.pop %v1374
    %v1376 = vmul.f32 1.0, %v1375
    %v1377 = vtanh.pop %v1370
    %v1379 = vrot.slane %v1284, 6
    %v1381 = vmul.f32 %v1376, %v1379
    %1383 = vrot.lane.b32.xlu0 %v1377, 96
    %v1384 = vpop.permute.xlu0 %1383
    %v1386 = vmul.f32 %v1376, %v1384
    %1388 = vrot.lane.b32.xlu0 %v1386, 16
    %v1389 = vpop.permute.xlu0 %1388
    %v1391 = vadd.f32 %v1381, %v1389
    %v1392 = vtanh.pop %v1391
    %1394 = vrot.lane.b32.xlu0 %v1392, 32
    %v1395 = vpop.permute.xlu0 %1394
    %v1397 = vmul.f32 %v1376, %v1395
    %v1398 = vld [vmem:[%s4] sm:$0x1]
    %v1400 = vlaneseq
    %v1401 = vshrl.u32 %v1400, 7
    %v1402 = vsub.s32 0, %v1401
    %v1403 = vrot.slane %v1398, %v1402
    %1404 = vrot.lane.b32.xlu0 %v1403, 64
    %v1405 = vpop.permute.xlu0 %1404
    %v1407 = vadd.f32 %v541, %v1405
    %v1408 = vxor.u32 %v1407, 2147483648
    %v1409 = vmul.f32 %v1408, 1.442695
    %v1410 = vpow.pop %v1409
    %v1411 = vadd.f32 %v1410, 1.0
    %v1412 = vrcp.pop %v1411
    %v1413 = vmul.f32 1.0, %v1412
    %v1414 = vtanh.pop %v1407
    %1416 = vrot.lane.b32.xlu0 %v1414, 96
    %v1417 = vpop.permute.xlu0 %1416
    %v1419 = vmul.f32 %v1413, %v1417
    %v1420 = vtanh.pop %v1419
    %1422 = vrot.lane.b32.xlu0 %v1420, 48
    %v1423 = vpop.permute.xlu0 %1422
    %v1425 = vmul.f32 %v1413, %v1423
    %1427 = vrot.lane.b32.xlu0 %v1397, 80
    %v1428 = vpop.permute.xlu0 %1427
    %1431 = vrot.lane.b32.xlu0 %v1425, 32
    %v1432 = vpop.permute.xlu0 %1431
    %v1434 = vsel %vm554, %v1428, %v1432
    %v1435 = vld [vmem:[%s5] sm:$0xff]
    %v1436 = vld [vmem:[%s5 + $0x8] sm:$0xff]
    %v1437 = vld [vmem:[%s5 + $0x10] sm:$0xff]
    %v1438 = vld [vmem:[%s5 + $0x18] sm:$0xff]
    %v1439 = vld [vmem:[%s6] sm:$0x1]
    %v1441 = vlaneseq
    %v1442 = vshrl.u32 %v1441, 7
    %v1443 = vsub.s32 0, %v1442
    %v1444 = vrot.slane %v1439, %v1443
    %v1447 = vrot.slane %v1434, 6
    %vm1448 = vcmask 261120
    %v1449 = vsel %vm1448, %v1447, 0
    %1451 = vmatprep.subr.mxu0 0.0
    %1452 = vmatpush1.msra.mxu0 %v1435
    %1453 = vmatprep.subr.mxu0 0.0
    %1454 = vmatpush1.msra.mxu0 %v1436
    %1455 = vmatprep.subr.mxu0 0.0
    %1456 = vmatpush1.msra.mxu0 %v1437
    %1457 = vmatprep.subr.mxu0 0.0
    %1458 = vmatpush1.msra.mxu0 %v1438
    %1459 = vmatprep.subr.mxu0 0.0
    %1460 = vmatpush1.msra.mxu0 0.0
    %1461 = vmatprep.subr.mxu0 0.0
    %1462 = vmatpush1.msra.mxu0 0.0
    %1463 = vmatprep.subr.mxu0 0.0
    %1464 = vmatpush1.msra.mxu0 0.0
    %1465 = vmatprep.subr.mxu0 0.0
    %1466 = vmatpush1.msra.mxu0 0.0
    %1467 = vmatprep.subr.mxu0 0.0
    %1468 = vmatpush1.msra.mxu0 0.0
    %1469 = vmatprep.subr.mxu0 0.0
    %1470 = vmatpush1.msra.mxu0 0.0
    %1471 = vmatprep.subr.mxu0 0.0
    %1472 = vmatpush1.msra.mxu0 0.0
    %1473 = vmatprep.subr.mxu0 0.0
    %1474 = vmatpush1.msra.mxu0 0.0
    %1475 = vmatprep.subr.mxu0 0.0
    %1476 = vmatpush1.msra.mxu0 0.0
    %1477 = vmatprep.subr.mxu0 0.0
    %1478 = vmatpush1.msra.mxu0 0.0
    %1479 = vmatprep.subr.mxu0 0.0
    %1480 = vmatpush1.msra.mxu0 0.0
    %1481 = vmatprep.subr.mxu0 0.0
    %1482 = vmatpush1.msra.mxu0 0.0
    %1483 = vmatprep.subr.mxu0 0.0
    %1484 = vmatpush1.msra.mxu0 0.0
    %1485 = vmatprep.subr.mxu0 0.0
    %1486 = vmatpush1.msra.mxu0 0.0
    %1487 = vmatprep.subr.mxu0 0.0
    %1488 = vmatpush1.msra.mxu0 0.0
    %1489 = vmatprep.subr.mxu0 0.0
    %1490 = vmatpush1.msra.mxu0 0.0
    %1491 = vmatprep.subr.mxu0 0.0
    %1492 = vmatpush1.msra.mxu0 0.0
    %1493 = vmatprep.subr.mxu0 0.0
    %1494 = vmatpush1.msra.mxu0 0.0
    %1495 = vmatprep.subr.mxu0 0.0
    %1496 = vmatpush1.msra.mxu0 0.0
    %1497 = vmatprep.subr.mxu0 0.0
    %1498 = vmatpush1.msra.mxu0 0.0
    %1499 = vmatprep.subr.mxu0 0.0
    %1500 = vmatpush1.msra.mxu0 0.0
    %1501 = vmatprep.subr.mxu0 0.0
    %1502 = vmatpush1.msra.mxu0 0.0
    %1503 = vmatprep.subr.mxu0 0.0
    %1504 = vmatpush1.msra.mxu0 0.0
    %1505 = vmatprep.subr.mxu0 0.0
    %1506 = vmatpush1.msra.mxu0 0.0
    %1507 = vmatprep.subr.mxu0 0.0
    %1508 = vmatpush1.msra.mxu0 0.0
    %1509 = vmatprep.subr.mxu0 0.0
    %1510 = vmatpush1.msra.mxu0 0.0
    %1511 = vmatprep.subr.mxu0 0.0
    %1512 = vmatpush1.msra.mxu0 0.0
    %1513 = vmatprep.subr.mxu0 0.0
    %1514 = vmatpush1.msra.mxu0 0.0
    %1515 = vmatprep.mubr.f32.mxu0 0.0
    %1516 = vmatmul.mubr.f32.gmra.mrb[0].mxu0 %v1449
    %v1517 = vpop.f32.mrb[0].mxu0
    %v1518 = vadd.f32 %v1444, %v1517
    %v1519 = vpop.f32.mrb[0].mxu0
    %1520 = vdwg.mxu0
    %v1521 = vmax.f32 %v1518, 0.0
    %v1522 = vld [vmem:[%s7] sm:$0xff]
    %v1523 = vld [vmem:[%s7 + $0x8] sm:$0x3]
    %v1524 = vld [vmem:[%s8] sm:$0x1]
    %v1526 = vlaneseq
    %v1527 = vshrl.u32 %v1526, 7
    %v1528 = vsub.s32 0, %v1527
    %v1529 = vrot.slane %v1524, %v1528
    %vm1531 = vcmask 80896
    %v1533 = vsel %vm1531, %v1521, 0
    %vm1535 = vcmask 1041408
    %v1537 = vsel %vm1535, %v1523, 0
    %1539 = vmatprep.subr.mxu0 0.0
    %1540 = vmatpush1.msra.mxu0 %v1522
    %1541 = vmatprep.subr.mxu0 0.0
    %1542 = vmatpush1.msra.mxu0 %v1537
    %1543 = vmatprep.subr.mxu0 0.0
    %1544 = vmatpush1.msra.mxu0 0.0
    %1545 = vmatprep.subr.mxu0 0.0
    %1546 = vmatpush1.msra.mxu0 0.0
    %1547 = vmatprep.subr.mxu0 0.0
    %1548 = vmatpush1.msra.mxu0 0.0
    %1549 = vmatprep.subr.mxu0 0.0
    %1550 = vmatpush1.msra.mxu0 0.0
    %1551 = vmatprep.subr.mxu0 0.0
    %1552 = vmatpush1.msra.mxu0 0.0
    %1553 = vmatprep.subr.mxu0 0.0
    %1554 = vmatpush1.msra.mxu0 0.0
    %1555 = vmatprep.subr.mxu0 0.0
    %1556 = vmatpush1.msra.mxu0 0.0
    %1557 = vmatprep.subr.mxu0 0.0
    %1558 = vmatpush1.msra.mxu0 0.0
    %1559 = vmatprep.subr.mxu0 0.0
    %1560 = vmatpush1.msra.mxu0 0.0
    %1561 = vmatprep.subr.mxu0 0.0
    %1562 = vmatpush1.msra.mxu0 0.0
    %1563 = vmatprep.subr.mxu0 0.0
    %1564 = vmatpush1.msra.mxu0 0.0
    %1565 = vmatprep.subr.mxu0 0.0
    %1566 = vmatpush1.msra.mxu0 0.0
    %1567 = vmatprep.subr.mxu0 0.0
    %1568 = vmatpush1.msra.mxu0 0.0
    %1569 = vmatprep.subr.mxu0 0.0
    %1570 = vmatpush1.msra.mxu0 0.0
    %1571 = vmatprep.subr.mxu0 0.0
    %1572 = vmatpush1.msra.mxu0 0.0
    %1573 = vmatprep.subr.mxu0 0.0
    %1574 = vmatpush1.msra.mxu0 0.0
    %1575 = vmatprep.subr.mxu0 0.0
    %1576 = vmatpush1.msra.mxu0 0.0
    %1577 = vmatprep.subr.mxu0 0.0
    %1578 = vmatpush1.msra.mxu0 0.0
    %1579 = vmatprep.subr.mxu0 0.0
    %1580 = vmatpush1.msra.mxu0 0.0
    %1581 = vmatprep.subr.mxu0 0.0
    %1582 = vmatpush1.msra.mxu0 0.0
    %1583 = vmatprep.subr.mxu0 0.0
    %1584 = vmatpush1.msra.mxu0 0.0
    %1585 = vmatprep.subr.mxu0 0.0
    %1586 = vmatpush1.msra.mxu0 0.0
    %1587 = vmatprep.subr.mxu0 0.0
    %1588 = vmatpush1.msra.mxu0 0.0
    %1589 = vmatprep.subr.mxu0 0.0
    %1590 = vmatpush1.msra.mxu0 0.0
    %1591 = vmatprep.subr.mxu0 0.0
    %1592 = vmatpush1.msra.mxu0 0.0
    %1593 = vmatprep.subr.mxu0 0.0
    %1594 = vmatpush1.msra.mxu0 0.0
    %1595 = vmatprep.subr.mxu0 0.0
    %1596 = vmatpush1.msra.mxu0 0.0
    %1597 = vmatprep.subr.mxu0 0.0
    %1598 = vmatpush1.msra.mxu0 0.0
    %1599 = vmatprep.subr.mxu0 0.0
    %1600 = vmatpush1.msra.mxu0 0.0
    %1601 = vmatprep.subr.mxu0 0.0
    %1602 = vmatpush1.msra.mxu0 0.0
    %1603 = vmatprep.mubr.f32.mxu0 0.0
    %1604 = vmatmul.mubr.f32.gmra.mrb[0].mxu0 %v1533
    %v1605 = vpop.f32.mrb[0].mxu0
    %v1606 = vadd.f32 %v1529, %v1605
    %v1607 = vpop.f32.mrb[0].mxu0
    %1608 = vdwg.mxu0
    %vm1609 = vcmask 17408
    %1610 = vst.msk [vmem:[#allocation5] sm:$0x3] %vm1609, %v1606
    // Predicated region
    $region42: #{tpu_custom_call.1} parent=1 // pred_check
      _
    $region43: #{tpu_custom_call.1} parent=1 // pred_check_branch
      %1612 = sbr.rel (0) target = $region45
    $region44: #{tpu_custom_call.1} parent=1 // pred_region
      %s1614 = ssub.s32 32, 32
      %1615 = vsyncadd [#allocation4], %s1614
      %s1617 = sshll.u32 [#allocation5], 4
      %s1618 = int_to_ptr.vmem [resolvable:$true] %s1617
      %1620 = dma.vmem_to_hbm [thread:$0]  %s1618, 32, %s9, [#allocation4]
    $region45: #{tpu_custom_call.1} parent=1 // pred_fallthru
      _
    // Predicated region
    $region46: #{tpu_custom_call.1} parent=1 // pred_check
      _
    $region47: #{tpu_custom_call.1} parent=1 // pred_check_branch
      %1622 = sbr.rel (0) target = $region49
    $region48: #{tpu_custom_call.1} parent=1 // pred_region
      %1623 = dma.done [#allocation4], 32
    $region49: #{tpu_custom_call.1} parent=1 // pred_fallthru
      _
    %1624 = vsyncpa [#allocation3], 1
    %1625 = vsyncpa [#allocation4], 1

</llo_original>
